<compile_context>
chip_gen: v6e
topology: v6e:2x2x1
jax: 0.10.0
libtpu: 0.0.40
codegen_flags: <defaults>
</compile_context>

<pallas_src>
import math

import jax
import jax.numpy as jnp
import numpy as np
from jax.experimental import pallas as pl
from jax.experimental.pallas import tpu as pltpu

_BN_EPS = 1e-4
_LANE = 128


def _round_up(x, m):
    return ((x + m - 1) // m) * m


def _cdiv(a, b):
    return -(-a // b)


def _fold_bn(w_oihw, gamma, beta, rmean, rvar):
    """Fold eval-mode BatchNorm into the conv weights (scale) and a per-channel shift."""
    scale = gamma / jnp.sqrt(rvar + _BN_EPS)                    # (Cout,)
    shift = (beta - rmean * scale).astype(jnp.float32)          # (Cout,)
    w = jnp.transpose(w_oihw, (2, 3, 1, 0)) * scale             # (3, 3, Cin, Cout)
    return w.astype(jnp.bfloat16), shift


def _pick_tm(M, bytes_per_row, *, target_step_bytes=2 << 20, quantum=256, tm_cap=8192):
    """M-tile: big enough to amortize the ~0.35us/grid-step overhead (>= ~2 MB of HBM
    traffic per step), a multiple of 256 for clean MXU passes, one tile when the whole
    problem fits (best on single-TC v5e/v6e), otherwise an even tile count so v7x's two
    TensorCores get balanced shards of the 'parallel' M axis."""
    if M <= quantum:
        return _round_up(max(M, 1), 8)
    tm = max(quantum, min(tm_cap, target_step_bytes // max(bytes_per_row, 1)))
    tm = _round_up(min(tm, M), quantum)
    if tm >= M:
        return _round_up(M, 8)
    ntiles = _cdiv(M, tm)
    if ntiles % 2:                       # prefer an even number of tiles (v7x megacore)
        ntiles += 1
        tm = _round_up(_cdiv(M, ntiles), quantum)
    return tm


def _vmem_limit_bytes(blocks):
    """Explicit VMEM budget from (shape, dtype, n_buffers) triples (lane/sublane padded)
    plus 30% headroom, capped so it is safe on v7x's 64 MiB physical VMEM while using
    the larger VMEM of v5e/v6e when the probe reports it."""
    need = 0
    for shape, dtype, bufs in blocks:
        if len(shape) >= 2:
            lead = math.prod(shape[:-2]) if len(shape) > 2 else 1
            tile = _round_up(shape[-2], 8) * _round_up(shape[-1], _LANE)
        else:
            lead, tile = 1, 8 * _round_up(shape[-1], _LANE)
        need += bufs * lead * tile * jnp.dtype(dtype).itemsize
    try:
        cap = int(0.7 * pltpu.get_tpu_info().vmem_capacity_bytes)
    except Exception:  # pragma: no cover - conservative fallback (v7x-safe)
        cap = 45 << 20
    cap = max(cap, 32 << 20)
    return int(min(max(int(need * 1.3), 32 << 20), cap))


# ----------------------------------------------------------------------------
# Stage 1: im2col (XLA glue) + Pallas GEMM with folded BN + ReLU
# ----------------------------------------------------------------------------
def _gemm_bn_relu_kernel(x_ref, w_ref, shift_ref, o_ref):
    acc = jnp.dot(x_ref[...], w_ref[...], preferred_element_type=jnp.float32)
    o_ref[...] = jnp.maximum(acc + shift_ref[...], 0.0).astype(o_ref.dtype)


def _conv1_im2col_gemm(x_nchw, w_oihw, gamma, beta, rmean, rvar):
    N, Cin, H, W = x_nchw.shape
    Cout = w_oihw.shape[0]
    Ho, Wo = (H + 1) // 2, (W + 1) // 2
    M, K = N * Ho * Wo, 9 * Cin

    # NCHW->NHWC + bf16 cast + zero-pad + im2col: a single XLA fusion feeding the GEMM.
    # K=27 lane layout is intentionally left narrow: this stage is DMA/overhead bound.
    xp = jnp.pad(jnp.transpose(x_nchw, (0, 2, 3, 1)).astype(jnp.bfloat16),
                 ((0, 0), (1, 1), (1, 1), (0, 0)))
    taps = [xp[:, kh:kh + 2 * Ho:2, kw:kw + 2 * Wo:2, :]
            for kh in range(3) for kw in range(3)]
    patches = jnp.concatenate(taps, axis=-1).reshape(M, K)

    wf, shift = _fold_bn(w_oihw, gamma, beta, rmean, rvar)
    w2d = wf.reshape(K, Cout)
    shift = shift.reshape(1, Cout)

    tm = _pick_tm(M, K * 2 + Cout * 2)
    grid = (_cdiv(M, tm),)
    vmem = _vmem_limit_bytes([
        ((tm, K), jnp.bfloat16, 2), ((K, Cout), jnp.bfloat16, 2),
        ((1, Cout), jnp.float32, 2), ((tm, Cout), jnp.bfloat16, 2),
        ((tm, Cout), jnp.float32, 1),                       # f32 accumulator headroom
    ])

    y = pl.pallas_call(
        _gemm_bn_relu_kernel,
        out_shape=jax.ShapeDtypeStruct((M, Cout), jnp.bfloat16),
        grid_spec=pltpu.PrefetchScalarGridSpec(
            num_scalar_prefetch=0,
            grid=grid,
            in_specs=[
                pl.BlockSpec((tm, K), lambda i: (i, 0)),
                # resident operands (constant index_map); TODO(synk): pl.Buffered(1)
                pl.BlockSpec((K, Cout), lambda i: (0, 0)),
                pl.BlockSpec((1, Cout), lambda i: (0, 0)),
            ],
            out_specs=pl.BlockSpec((tm, Cout), lambda i: (i, 0)),
        ),
        compiler_params=pltpu.CompilerParams(
            dimension_semantics=("parallel",),
            vmem_limit_bytes=vmem,
        ),
    )(patches, w2d, shift)
    return y.reshape(N, Ho, Wo, Cout)


# ----------------------------------------------------------------------------
# Stage 2: fused conv3x3/s2/p1 + BN + ReLU (no im2col buffer in HBM)
# ----------------------------------------------------------------------------
def _conv2_fused(y1_nhwc, w_oihw, gamma, beta, rmean, rvar):
    N, H1, W1, C = y1_nhwc.shape
    Cout = w_oihw.shape[0]
    H2, W2 = (H1 + 1) // 2, (W1 + 1) // 2
    HW = H2 * W2
    PR = (H2 + 1) * W2                       # rows per tap plane

    # One XLA glue pass: zero-pad + rearrange into 6 tap planes (h-parity x w-tap),
    # 1.5x the activation (im2col would be 2.25x plus an extra HBM round trip).
    # plane[hp*3+kw][n, i, w2, :] == padded_y1[n, 2*i + hp, 2*w2 + kw, :]
    xp = jnp.pad(y1_nhwc,
                 ((0, 0), (1, 2 * H2 + 1 - H1), (1, 2 * W2 + 1 - W1), (0, 0)))
    planes = [xp[:, hp::2, kw:kw + 2 * W2:2, :] for hp in (0, 1) for kw in range(3)]
    xg = jnp.stack(planes, axis=1).reshape(N, 6, PR, C)

    wf, shift = _fold_bn(w_oihw, gamma, beta, rmean, rvar)
    wt = wf.reshape(9, C, Cout)              # tap index = kh*3 + kw
    shift = shift.reshape(1, Cout)

    def kernel(x_ref, w_ref, shift_ref, o_ref, acc_ref):
        first = True
        for kh in range(3):
            row0 = (kh // 2) * W2            # output row h2 -> plane row h2 + kh//2
            for kw in range(3):
                p = (kh % 2) * 3 + kw
                lhs = x_ref[0, p, row0:row0 + HW, :]         # contiguous (HW, C) bf16
                contrib = jnp.dot(lhs, w_ref[kh * 3 + kw],
                                  preferred_element_type=jnp.float32)
                if first:
                    acc_ref[...] = contrib
                    first = False
                else:
                    acc_ref[...] += contrib
        # f32 epilogue (folded BN shift + ReLU), cast only at the store.
        o_ref[0] = jnp.maximum(acc_ref[...] + shift_ref[...], 0.0).astype(o_ref.dtype)

    vmem = _vmem_limit_bytes([
        ((1, 6, PR, C), jnp.bfloat16, 2), ((9, C, Cout), jnp.bfloat16, 2),
        ((1, Cout), jnp.float32, 2), ((1, HW, Cout), jnp.float32, 2),
        ((HW, Cout), jnp.float32, 1),
    ])

    # Grid over images: whole per-image tap-plane slab resident in VMEM; images are
    # independent ("parallel") so v7x's two TensorCores split the batch.
    y = pl.pallas_call(
        kernel,
        out_shape=jax.ShapeDtypeStruct((N, HW, Cout), jnp.float32),
        grid_spec=pltpu.PrefetchScalarGridSpec(
            num_scalar_prefetch=0,
            grid=(N,),
            in_specs=[
                pl.BlockSpec((1, 6, PR, C), lambda n: (n, 0, 0, 0)),
                pl.BlockSpec((9, C, Cout), lambda n: (0, 0, 0)),
                pl.BlockSpec((1, Cout), lambda n: (0, 0)),
            ],
            out_specs=pl.BlockSpec((1, HW, Cout), lambda n: (n, 0, 0)),
            scratch_shapes=[pltpu.VMEM((HW, Cout), jnp.float32)],
        ),
        compiler_params=pltpu.CompilerParams(
            dimension_semantics=("parallel",),
            vmem_limit_bytes=vmem,
        ),
    )(xg, wt, shift)
    return y.reshape(N, H2, W2, Cout)


def patch_embed_forward(x_nchw, params):
    """PatchEmbed.forward: NCHW f32 in -> NCHW f32 out (eval-mode BatchNorm semantics)."""
    y1 = _conv1_im2col_gemm(x_nchw, params["w1"], params["g1"], params["b1"],
                            params["rm1"], params["rv1"])          # (N,H/2,W/2,64) bf16
    y2 = _conv2_fused(y1, params["w2"], params["g2"], params["b2"],
                      params["rm2"], params["rv2"])                # (N,H/4,W/4,96) f32
    # NHWC -> NCHW to match the PyTorch module boundary.
    # TODO(synk): drop this transpose if the downstream FasterViT block takes NHWC.
    return jnp.transpose(y2, (0, 3, 1, 2))


# ----------------------------------------------------------------------------
# Pure-JAX f32 reference (for correctness check)
# ----------------------------------------------------------------------------
def _ref_forward(x_nchw, params):
    def block(x, w, g, b, rm, rv):
        y = jax.lax.conv_general_dilated(
            x, w, window_strides=(2, 2), padding=((1, 1), (1, 1)),
            dimension_numbers=("NCHW", "OIHW", "NCHW"))
        scale = g / jnp.sqrt(rv + _BN_EPS)
        shift = b - rm * scale
        y = y * scale[None, :, None, None] + shift[None, :, None, None]
        return jnp.maximum(y, 0.0)

    x = block(x_nchw, params["w1"], params["g1"], params["b1"],
              params["rm1"], params["rv1"])
    x = block(x, params["w2"], params["g2"], params["b2"],
              params["rm2"], params["rv2"])
    return x


# ----------------------------------------------------------------------------
# Deterministic parameter init (shapes from PatchEmbed.__init__ defaults)
# ----------------------------------------------------------------------------
def init_params(key, in_chans=3, in_dim=64, dim=96):
    ks = jax.random.split(key, 10)
    return {
        "w1": jax.random.normal(ks[0], (in_dim, in_chans, 3, 3), jnp.float32) * 0.1,
        "g1": jax.random.uniform(ks[1], (in_dim,), jnp.float32, 0.5, 1.5),
        "b1": jax.random.normal(ks[2], (in_dim,), jnp.float32) * 0.1,
        "rm1": jax.random.normal(ks[3], (in_dim,), jnp.float32) * 0.1,
        "rv1": jax.random.uniform(ks[4], (in_dim,), jnp.float32, 0.5, 1.5),
        "w2": jax.random.normal(ks[5], (dim, in_dim, 3, 3), jnp.float32) * 0.05,
        "g2": jax.random.uniform(ks[6], (dim,), jnp.float32, 0.5, 1.5),
        "b2": jax.random.normal(ks[7], (dim,), jnp.float32) * 0.1,
        "rm2": jax.random.normal(ks[8], (dim,), jnp.float32) * 0.1,
        "rv2": jax.random.uniform(ks[9], (dim,), jnp.float32, 0.5, 1.5),
    }


if __name__ == "__main__":
    key = jax.random.PRNGKey(0)
    k_param, k_x = jax.random.split(key)

    # Small input consistent with the module defaults: NCHW = (2, 3, 32, 32)
    x = jax.random.normal(k_x, (2, 3, 32, 32), jnp.float32)
    params = init_params(k_param)

    out = jax.block_until_ready(jax.jit(patch_embed_forward)(x, params))
    assert out.shape == (2, 96, 8, 8), out.shape

    ref = jax.block_until_ready(_ref_forward(x, params))
    max_err = float(jnp.max(jnp.abs(out - ref)))
    # bf16 MXU operands + bf16 intermediate activation -> relaxed tolerance vs f32 ref.
    assert np.allclose(np.asarray(out), np.asarray(ref), atol=5e-2, rtol=5e-2), max_err

    print("KERNEL_OK")
</pallas_src>

<mosaic_0001>
module attributes {stable_mosaic.version = 11 : i64} {
  func.func @_gemm_bn_relu_kernel(%arg0: i32, %arg1: memref<512x27xbf16, #tpu.memory_space<vmem>>, %arg2: memref<27x64xbf16, #tpu.memory_space<vmem>>, %arg3: memref<1x64xf32, #tpu.memory_space<vmem>>, %arg4: memref<512x64xbf16, #tpu.memory_space<vmem>>) attributes {dimension_semantics = [#tpu.dimension_semantics<parallel>], iteration_bounds = array<i64: 1>, scalar_prefetch = 0 : i64, scratch_operands = 0 : i64, tpu.core_type = #tpu.core_type<tc>, window_params = [{transform_indices = @transform_0, window_bounds = array<i64: 512, 27>}, {pipeline_mode = #tpu.pipeline_mode<synchronous>, transform_indices = @transform_1, window_bounds = array<i64: 27, 64>}, {pipeline_mode = #tpu.pipeline_mode<synchronous>, transform_indices = @transform_2, window_bounds = array<i64: 1, 64>}, {transform_indices = @transform_3, window_bounds = array<i64: 512, 64>}]} {
    %c0 = arith.constant 0 : index
    %c0_0 = arith.constant 0 : index
    %0 = vector.load %arg1[%c0, %c0_0] : memref<512x27xbf16, #tpu.memory_space<vmem>>, vector<512x27xbf16>
    %c0_1 = arith.constant 0 : index
    %c0_2 = arith.constant 0 : index
    %1 = vector.load %arg2[%c0_1, %c0_2] : memref<27x64xbf16, #tpu.memory_space<vmem>>, vector<27x64xbf16>
    %cst = arith.constant dense<0.000000e+00> : vector<512x64xf32>
    %2 = tpu.matmul %0, %1, %cst {dimension_numbers = #tpu.dot_dimension_numbers<[1], [0], [0], [1], [0, 0, 1, 1], [], []>} : vector<512x27xbf16>, vector<27x64xbf16>, vector<512x64xf32> -> vector<512x64xf32>
    %c0_3 = arith.constant 0 : index
    %c0_4 = arith.constant 0 : index
    %3 = vector.load %arg3[%c0_3, %c0_4] : memref<1x64xf32, #tpu.memory_space<vmem>>, vector<1x64xf32>
    %4 = vector.broadcast %3 : vector<1x64xf32> to vector<512x64xf32>
    %5 = arith.addf %2, %4 : vector<512x64xf32>
    %cst_5 = arith.constant 0.000000e+00 : f32
    %6 = vector.broadcast %cst_5 : f32 to vector<512x64xf32>
    %7 = arith.maximumf %5, %6 : vector<512x64xf32>
    %8 = arith.truncf %7 : vector<512x64xf32> to vector<512x64xbf16>
    %c0_6 = arith.constant 0 : index
    %c0_7 = arith.constant 0 : index
    %9 = vector.load %arg4[%c0_6, %c0_7] : memref<512x64xbf16, #tpu.memory_space<vmem>>, vector<512x64xbf16>
    tpu.vector_store %arg4[%c0_6, %c0_7], %8 {strides = array<i32>} : memref<512x64xbf16, #tpu.memory_space<vmem>>, vector<512x64xbf16>,
    return
  }
  func.func @transform_0(%arg0: i32) -> (i32, i32) {
    %c0_i32 = arith.constant 0 : i32
    %c0_i32_0 = arith.constant 0 : i32
    return %arg0, %c0_i32 : i32, i32
  }
  func.func @transform_1(%arg0: i32) -> (i32, i32) {
    %c0_i32 = arith.constant 0 : i32
    %c0_i32_0 = arith.constant 0 : i32
    %c0_i32_1 = arith.constant 0 : i32
    return %c0_i32, %c0_i32_0 : i32, i32
  }
  func.func @transform_2(%arg0: i32) -> (i32, i32) {
    %c0_i32 = arith.constant 0 : i32
    %c0_i32_0 = arith.constant 0 : i32
    %c0_i32_1 = arith.constant 0 : i32
    return %c0_i32, %c0_i32_0 : i32, i32
  }
  func.func @transform_3(%arg0: i32) -> (i32, i32) {
    %c0_i32 = arith.constant 0 : i32
    %c0_i32_0 = arith.constant 0 : i32
    return %arg0, %c0_i32 : i32, i32
  }
}

module attributes {stable_mosaic.version = 11 : i64} {
  func.func @kernel(%arg0: i32, %arg1: memref<1x6x72x64xbf16, #tpu.memory_space<vmem>>, %arg2: memref<9x64x96xbf16, #tpu.memory_space<vmem>>, %arg3: memref<1x96xf32, #tpu.memory_space<vmem>>, %arg4: memref<1x64x96xf32, #tpu.memory_space<vmem>>, %arg5: memref<64x96xf32, #tpu.memory_space<vmem>>) attributes {dimension_semantics = [#tpu.dimension_semantics<parallel>], iteration_bounds = array<i64: 2>, scalar_prefetch = 0 : i64, scratch_operands = 1 : i64, tpu.core_type = #tpu.core_type<tc>, window_params = [{transform_indices = @transform_0, window_bounds = array<i64: 1, 6, 72, 64>}, {pipeline_mode = #tpu.pipeline_mode<synchronous>, transform_indices = @transform_1, window_bounds = array<i64: 9, 64, 96>}, {pipeline_mode = #tpu.pipeline_mode<synchronous>, transform_indices = @transform_2, window_bounds = array<i64: 1, 96>}, {transform_indices = @transform_3, window_bounds = array<i64: 1, 64, 96>}]} {
    %c0 = arith.constant 0 : index
    %c0_0 = arith.constant 0 : index
    %c0_1 = arith.constant 0 : index
    %c0_2 = arith.constant 0 : index
    %0 = vector.load %arg1[%c0, %c0_0, %c0_1, %c0_2] : memref<1x6x72x64xbf16, #tpu.memory_space<vmem>>, vector<1x1x64x64xbf16>
    %1 = vector.shape_cast %0 : vector<1x1x64x64xbf16> to vector<64x64xbf16>
    %c0_3 = arith.constant 0 : index
    %c0_4 = arith.constant 0 : index
    %c0_5 = arith.constant 0 : index
    %2 = vector.load %arg2[%c0_3, %c0_4, %c0_5] : memref<9x64x96xbf16, #tpu.memory_space<vmem>>, vector<1x64x96xbf16>
    %3 = vector.shape_cast %2 : vector<1x64x96xbf16> to vector<64x96xbf16>
    %cst = arith.constant dense<0.000000e+00> : vector<64x96xf32>
    %4 = tpu.matmul %1, %3, %cst {dimension_numbers = #tpu.dot_dimension_numbers<[1], [0], [0], [1], [0, 0, 1, 1], [], []>} : vector<64x64xbf16>, vector<64x96xbf16>, vector<64x96xf32> -> vector<64x96xf32>
    %c0_6 = arith.constant 0 : index
    %c0_7 = arith.constant 0 : index
    %5 = vector.load %arg5[%c0_6, %c0_7] : memref<64x96xf32, #tpu.memory_space<vmem>>, vector<64x96xf32>
    tpu.vector_store %arg5[%c0_6, %c0_7], %4 {strides = array<i32>} : memref<64x96xf32, #tpu.memory_space<vmem>>, vector<64x96xf32>,
    %c0_8 = arith.constant 0 : index
    %c1 = arith.constant 1 : index
    %c0_9 = arith.constant 0 : index
    %c0_10 = arith.constant 0 : index
    %6 = vector.load %arg1[%c0_8, %c1, %c0_9, %c0_10] : memref<1x6x72x64xbf16, #tpu.memory_space<vmem>>, vector<1x1x64x64xbf16>
    %7 = vector.shape_cast %6 : vector<1x1x64x64xbf16> to vector<64x64xbf16>
    %c1_11 = arith.constant 1 : index
    %c0_12 = arith.constant 0 : index
    %c0_13 = arith.constant 0 : index
    %8 = vector.load %arg2[%c1_11, %c0_12, %c0_13] : memref<9x64x96xbf16, #tpu.memory_space<vmem>>, vector<1x64x96xbf16>
    %9 = vector.shape_cast %8 : vector<1x64x96xbf16> to vector<64x96xbf16>
    %cst_14 = arith.constant dense<0.000000e+00> : vector<64x96xf32>
    %10 = tpu.matmul %7, %9, %cst_14 {dimension_numbers = #tpu.dot_dimension_numbers<[1], [0], [0], [1], [0, 0, 1, 1], [], []>} : vector<64x64xbf16>, vector<64x96xbf16>, vector<64x96xf32> -> vector<64x96xf32>
    %c0_15 = arith.constant 0 : index
    %c0_16 = arith.constant 0 : index
    %11 = vector.load %arg5[%c0_15, %c0_16] : memref<64x96xf32, #tpu.memory_space<vmem>>, vector<64x96xf32>
    %12 = arith.addf %11, %10 : vector<64x96xf32>
    %c0_17 = arith.constant 0 : index
    %c0_18 = arith.constant 0 : index
    %13 = vector.load %arg5[%c0_17, %c0_18] : memref<64x96xf32, #tpu.memory_space<vmem>>, vector<64x96xf32>
    tpu.vector_store %arg5[%c0_17, %c0_18], %12 {strides = array<i32>} : memref<64x96xf32, #tpu.memory_space<vmem>>, vector<64x96xf32>,
    %c0_19 = arith.constant 0 : index
    %c2 = arith.constant 2 : index
    %c0_20 = arith.constant 0 : index
    %c0_21 = arith.constant 0 : index
    %14 = vector.load %arg1[%c0_19, %c2, %c0_20, %c0_21] : memref<1x6x72x64xbf16, #tpu.memory_space<vmem>>, vector<1x1x64x64xbf16>
    %15 = vector.shape_cast %14 : vector<1x1x64x64xbf16> to vector<64x64xbf16>
    %c2_22 = arith.constant 2 : index
    %c0_23 = arith.constant 0 : index
    %c0_24 = arith.constant 0 : index
    %16 = vector.load %arg2[%c2_22, %c0_23, %c0_24] : memref<9x64x96xbf16, #tpu.memory_space<vmem>>, vector<1x64x96xbf16>
    %17 = vector.shape_cast %16 : vector<1x64x96xbf16> to vector<64x96xbf16>
    %cst_25 = arith.constant dense<0.000000e+00> : vector<64x96xf32>
    %18 = tpu.matmul %15, %17, %cst_25 {dimension_numbers = #tpu.dot_dimension_numbers<[1], [0], [0], [1], [0, 0, 1, 1], [], []>} : vector<64x64xbf16>, vector<64x96xbf16>, vector<64x96xf32> -> vector<64x96xf32>
    %c0_26 = arith.constant 0 : index
    %c0_27 = arith.constant 0 : index
    %19 = vector.load %arg5[%c0_26, %c0_27] : memref<64x96xf32, #tpu.memory_space<vmem>>, vector<64x96xf32>
    %20 = arith.addf %19, %18 : vector<64x96xf32>
    %c0_28 = arith.constant 0 : index
    %c0_29 = arith.constant 0 : index
    %21 = vector.load %arg5[%c0_28, %c0_29] : memref<64x96xf32, #tpu.memory_space<vmem>>, vector<64x96xf32>
    tpu.vector_store %arg5[%c0_28, %c0_29], %20 {strides = array<i32>} : memref<64x96xf32, #tpu.memory_space<vmem>>, vector<64x96xf32>,
    %c0_30 = arith.constant 0 : index
    %c3 = arith.constant 3 : index
    %c0_31 = arith.constant 0 : index
    %c0_32 = arith.constant 0 : index
    %22 = vector.load %arg1[%c0_30, %c3, %c0_31, %c0_32] : memref<1x6x72x64xbf16, #tpu.memory_space<vmem>>, vector<1x1x64x64xbf16>
    %23 = vector.shape_cast %22 : vector<1x1x64x64xbf16> to vector<64x64xbf16>
    %c3_33 = arith.constant 3 : index
    %c0_34 = arith.constant 0 : index
    %c0_35 = arith.constant 0 : index
    %24 = vector.load %arg2[%c3_33, %c0_34, %c0_35] : memref<9x64x96xbf16, #tpu.memory_space<vmem>>, vector<1x64x96xbf16>
    %25 = vector.shape_cast %24 : vector<1x64x96xbf16> to vector<64x96xbf16>
    %cst_36 = arith.constant dense<0.000000e+00> : vector<64x96xf32>
    %26 = tpu.matmul %23, %25, %cst_36 {dimension_numbers = #tpu.dot_dimension_numbers<[1], [0], [0], [1], [0, 0, 1, 1], [], []>} : vector<64x64xbf16>, vector<64x96xbf16>, vector<64x96xf32> -> vector<64x96xf32>
    %c0_37 = arith.constant 0 : index
    %c0_38 = arith.constant 0 : index
    %27 = vector.load %arg5[%c0_37, %c0_38] : memref<64x96xf32, #tpu.memory_space<vmem>>, vector<64x96xf32>
    %28 = arith.addf %27, %26 : vector<64x96xf32>
    %c0_39 = arith.constant 0 : index
    %c0_40 = arith.constant 0 : index
    %29 = vector.load %arg5[%c0_39, %c0_40] : memref<64x96xf32, #tpu.memory_space<vmem>>, vector<64x96xf32>
    tpu.vector_store %arg5[%c0_39, %c0_40], %28 {strides = array<i32>} : memref<64x96xf32, #tpu.memory_space<vmem>>, vector<64x96xf32>,
    %c0_41 = arith.constant 0 : index
    %c4 = arith.constant 4 : index
    %c0_42 = arith.constant 0 : index
    %c0_43 = arith.constant 0 : index
    %30 = vector.load %arg1[%c0_41, %c4, %c0_42, %c0_43] : memref<1x6x72x64xbf16, #tpu.memory_space<vmem>>, vector<1x1x64x64xbf16>
    %31 = vector.shape_cast %30 : vector<1x1x64x64xbf16> to vector<64x64xbf16>
    %c4_44 = arith.constant 4 : index
    %c0_45 = arith.constant 0 : index
    %c0_46 = arith.constant 0 : index
    %32 = vector.load %arg2[%c4_44, %c0_45, %c0_46] : memref<9x64x96xbf16, #tpu.memory_space<vmem>>, vector<1x64x96xbf16>
    %33 = vector.shape_cast %32 : vector<1x64x96xbf16> to vector<64x96xbf16>
    %cst_47 = arith.constant dense<0.000000e+00> : vector<64x96xf32>
    %34 = tpu.matmul %31, %33, %cst_47 {dimension_numbers = #tpu.dot_dimension_numbers<[1], [0], [0], [1], [0, 0, 1, 1], [], []>} : vector<64x64xbf16>, vector<64x96xbf16>, vector<64x96xf32> -> vector<64x96xf32>
    %c0_48 = arith.constant 0 : index
    %c0_49 = arith.constant 0 : index
    %35 = vector.load %arg5[%c0_48, %c0_49] : memref<64x96xf32, #tpu.memory_space<vmem>>, vector<64x96xf32>
    %36 = arith.addf %35, %34 : vector<64x96xf32>
    %c0_50 = arith.constant 0 : index
    %c0_51 = arith.constant 0 : index
    %37 = vector.load %arg5[%c0_50, %c0_51] : memref<64x96xf32, #tpu.memory_space<vmem>>, vector<64x96xf32>
    tpu.vector_store %arg5[%c0_50, %c0_51], %36 {strides = array<i32>} : memref<64x96xf32, #tpu.memory_space<vmem>>, vector<64x96xf32>,
    %c0_52 = arith.constant 0 : index
    %c5 = arith.constant 5 : index
    %c0_53 = arith.constant 0 : index
    %c0_54 = arith.constant 0 : index
    %38 = vector.load %arg1[%c0_52, %c5, %c0_53, %c0_54] : memref<1x6x72x64xbf16, #tpu.memory_space<vmem>>, vector<1x1x64x64xbf16>
    %39 = vector.shape_cast %38 : vector<1x1x64x64xbf16> to vector<64x64xbf16>
    %c5_55 = arith.constant 5 : index
    %c0_56 = arith.constant 0 : index
    %c0_57 = arith.constant 0 : index
    %40 = vector.load %arg2[%c5_55, %c0_56, %c0_57] : memref<9x64x96xbf16, #tpu.memory_space<vmem>>, vector<1x64x96xbf16>
    %41 = vector.shape_cast %40 : vector<1x64x96xbf16> to vector<64x96xbf16>
    %cst_58 = arith.constant dense<0.000000e+00> : vector<64x96xf32>
    %42 = tpu.matmul %39, %41, %cst_58 {dimension_numbers = #tpu.dot_dimension_numbers<[1], [0], [0], [1], [0, 0, 1, 1], [], []>} : vector<64x64xbf16>, vector<64x96xbf16>, vector<64x96xf32> -> vector<64x96xf32>
    %c0_59 = arith.constant 0 : index
    %c0_60 = arith.constant 0 : index
    %43 = vector.load %arg5[%c0_59, %c0_60] : memref<64x96xf32, #tpu.memory_space<vmem>>, vector<64x96xf32>
    %44 = arith.addf %43, %42 : vector<64x96xf32>
    %c0_61 = arith.constant 0 : index
    %c0_62 = arith.constant 0 : index
    %45 = vector.load %arg5[%c0_61, %c0_62] : memref<64x96xf32, #tpu.memory_space<vmem>>, vector<64x96xf32>
    tpu.vector_store %arg5[%c0_61, %c0_62], %44 {strides = array<i32>} : memref<64x96xf32, #tpu.memory_space<vmem>>, vector<64x96xf32>,
    %c0_63 = arith.constant 0 : index
    %c0_64 = arith.constant 0 : index
    %c8 = arith.constant 8 : index
    %c0_65 = arith.constant 0 : index
    %46 = vector.load %arg1[%c0_63, %c0_64, %c8, %c0_65] : memref<1x6x72x64xbf16, #tpu.memory_space<vmem>>, vector<1x1x64x64xbf16>
    %47 = vector.shape_cast %46 : vector<1x1x64x64xbf16> to vector<64x64xbf16>
    %c6 = arith.constant 6 : index
    %c0_66 = arith.constant 0 : index
    %c0_67 = arith.constant 0 : index
    %48 = vector.load %arg2[%c6, %c0_66, %c0_67] : memref<9x64x96xbf16, #tpu.memory_space<vmem>>, vector<1x64x96xbf16>
    %49 = vector.shape_cast %48 : vector<1x64x96xbf16> to vector<64x96xbf16>
    %cst_68 = arith.constant dense<0.000000e+00> : vector<64x96xf32>
    %50 = tpu.matmul %47, %49, %cst_68 {dimension_numbers = #tpu.dot_dimension_numbers<[1], [0], [0], [1], [0, 0, 1, 1], [], []>} : vector<64x64xbf16>, vector<64x96xbf16>, vector<64x96xf32> -> vector<64x96xf32>
    %c0_69 = arith.constant 0 : index
    %c0_70 = arith.constant 0 : index
    %51 = vector.load %arg5[%c0_69, %c0_70] : memref<64x96xf32, #tpu.memory_space<vmem>>, vector<64x96xf32>
    %52 = arith.addf %51, %50 : vector<64x96xf32>
    %c0_71 = arith.constant 0 : index
    %c0_72 = arith.constant 0 : index
    %53 = vector.load %arg5[%c0_71, %c0_72] : memref<64x96xf32, #tpu.memory_space<vmem>>, vector<64x96xf32>
    tpu.vector_store %arg5[%c0_71, %c0_72], %52 {strides = array<i32>} : memref<64x96xf32, #tpu.memory_space<vmem>>, vector<64x96xf32>,
    %c0_73 = arith.constant 0 : index
    %c1_74 = arith.constant 1 : index
    %c8_75 = arith.constant 8 : index
    %c0_76 = arith.constant 0 : index
    %54 = vector.load %arg1[%c0_73, %c1_74, %c8_75, %c0_76] : memref<1x6x72x64xbf16, #tpu.memory_space<vmem>>, vector<1x1x64x64xbf16>
    %55 = vector.shape_cast %54 : vector<1x1x64x64xbf16> to vector<64x64xbf16>
    %c7 = arith.constant 7 : index
    %c0_77 = arith.constant 0 : index
    %c0_78 = arith.constant 0 : index
    %56 = vector.load %arg2[%c7, %c0_77, %c0_78] : memref<9x64x96xbf16, #tpu.memory_space<vmem>>, vector<1x64x96xbf16>
    %57 = vector.shape_cast %56 : vector<1x64x96xbf16> to vector<64x96xbf16>
    %cst_79 = arith.constant dense<0.000000e+00> : vector<64x96xf32>
    %58 = tpu.matmul %55, %57, %cst_79 {dimension_numbers = #tpu.dot_dimension_numbers<[1], [0], [0], [1], [0, 0, 1, 1], [], []>} : vector<64x64xbf16>, vector<64x96xbf16>, vector<64x96xf32> -> vector<64x96xf32>
    %c0_80 = arith.constant 0 : index
    %c0_81 = arith.constant 0 : index
    %59 = vector.load %arg5[%c0_80, %c0_81] : memref<64x96xf32, #tpu.memory_space<vmem>>, vector<64x96xf32>
    %60 = arith.addf %59, %58 : vector<64x96xf32>
    %c0_82 = arith.constant 0 : index
    %c0_83 = arith.constant 0 : index
    %61 = vector.load %arg5[%c0_82, %c0_83] : memref<64x96xf32, #tpu.memory_space<vmem>>, vector<64x96xf32>
    tpu.vector_store %arg5[%c0_82, %c0_83], %60 {strides = array<i32>} : memref<64x96xf32, #tpu.memory_space<vmem>>, vector<64x96xf32>,
    %c0_84 = arith.constant 0 : index
    %c2_85 = arith.constant 2 : index
    %c8_86 = arith.constant 8 : index
    %c0_87 = arith.constant 0 : index
    %62 = vector.load %arg1[%c0_84, %c2_85, %c8_86, %c0_87] : memref<1x6x72x64xbf16, #tpu.memory_space<vmem>>, vector<1x1x64x64xbf16>
    %63 = vector.shape_cast %62 : vector<1x1x64x64xbf16> to vector<64x64xbf16>
    %c8_88 = arith.constant 8 : index
    %c0_89 = arith.constant 0 : index
    %c0_90 = arith.constant 0 : index
    %64 = vector.load %arg2[%c8_88, %c0_89, %c0_90] : memref<9x64x96xbf16, #tpu.memory_space<vmem>>, vector<1x64x96xbf16>
    %65 = vector.shape_cast %64 : vector<1x64x96xbf16> to vector<64x96xbf16>
    %cst_91 = arith.constant dense<0.000000e+00> : vector<64x96xf32>
    %66 = tpu.matmul %63, %65, %cst_91 {dimension_numbers = #tpu.dot_dimension_numbers<[1], [0], [0], [1], [0, 0, 1, 1], [], []>} : vector<64x64xbf16>, vector<64x96xbf16>, vector<64x96xf32> -> vector<64x96xf32>
    %c0_92 = arith.constant 0 : index
    %c0_93 = arith.constant 0 : index
    %67 = vector.load %arg5[%c0_92, %c0_93] : memref<64x96xf32, #tpu.memory_space<vmem>>, vector<64x96xf32>
    %68 = arith.addf %67, %66 : vector<64x96xf32>
    %c0_94 = arith.constant 0 : index
    %c0_95 = arith.constant 0 : index
    %69 = vector.load %arg5[%c0_94, %c0_95] : memref<64x96xf32, #tpu.memory_space<vmem>>, vector<64x96xf32>
    tpu.vector_store %arg5[%c0_94, %c0_95], %68 {strides = array<i32>} : memref<64x96xf32, #tpu.memory_space<vmem>>, vector<64x96xf32>,
    %c0_96 = arith.constant 0 : index
    %c0_97 = arith.constant 0 : index
    %70 = vector.load %arg5[%c0_96, %c0_97] : memref<64x96xf32, #tpu.memory_space<vmem>>, vector<64x96xf32>
    %c0_98 = arith.constant 0 : index
    %c0_99 = arith.constant 0 : index
    %71 = vector.load %arg3[%c0_98, %c0_99] : memref<1x96xf32, #tpu.memory_space<vmem>>, vector<1x96xf32>
    %72 = vector.broadcast %71 : vector<1x96xf32> to vector<64x96xf32>
    %73 = arith.addf %70, %72 : vector<64x96xf32>
    %cst_100 = arith.constant 0.000000e+00 : f32
    %74 = vector.broadcast %cst_100 : f32 to vector<64x96xf32>
    %75 = arith.maximumf %73, %74 : vector<64x96xf32>
    %c0_101 = arith.constant 0 : index
    %c0_102 = arith.constant 0 : index
    %c0_103 = arith.constant 0 : index
    %76 = vector.load %arg4[%c0_101, %c0_102, %c0_103] : memref<1x64x96xf32, #tpu.memory_space<vmem>>, vector<1x64x96xf32>
    %77 = vector.shape_cast %76 : vector<1x64x96xf32> to vector<64x96xf32>
    %78 = vector.shape_cast %75 : vector<64x96xf32> to vector<1x64x96xf32>
    tpu.vector_store %arg4[%c0_101, %c0_102, %c0_103], %78 {strides = array<i32>} : memref<1x64x96xf32, #tpu.memory_space<vmem>>, vector<1x64x96xf32>,
    return
  }
  func.func @transform_0(%arg0: i32) -> (i32, i32, i32, i32) {
    %c0_i32 = arith.constant 0 : i32
    %c0_i32_0 = arith.constant 0 : i32
    %c0_i32_1 = arith.constant 0 : i32
    %c0_i32_2 = arith.constant 0 : i32
    return %arg0, %c0_i32, %c0_i32_0, %c0_i32_1 : i32, i32, i32, i32
  }
  func.func @transform_1(%arg0: i32) -> (i32, i32, i32) {
    %c0_i32 = arith.constant 0 : i32
    %c0_i32_0 = arith.constant 0 : i32
    %c0_i32_1 = arith.constant 0 : i32
    %c0_i32_2 = arith.constant 0 : i32
    return %c0_i32, %c0_i32_0, %c0_i32_1 : i32, i32, i32
  }
  func.func @transform_2(%arg0: i32) -> (i32, i32) {
    %c0_i32 = arith.constant 0 : i32
    %c0_i32_0 = arith.constant 0 : i32
    %c0_i32_1 = arith.constant 0 : i32
    return %c0_i32, %c0_i32_0 : i32, i32
  }
  func.func @transform_3(%arg0: i32) -> (i32, i32, i32) {
    %c0_i32 = arith.constant 0 : i32
    %c0_i32_0 = arith.constant 0 : i32
    %c0_i32_1 = arith.constant 0 : i32
    return %arg0, %c0_i32, %c0_i32_0 : i32, i32, i32
  }
}

</mosaic_0001>

<llo_original>
// kernel: patch_embed_forward.2
$region0: #{patch_embed_forward.2}
  #allocation0 [shape = 'u32[]', space=smem, size = 0x4, offset = 0x4, fixed_abs, tag = 'smem constant byte address 0x4 - core index']
  #allocation1 [shape = 'u32[144,128]{1,0:T(1,128)}', space=vmem, size = 0x12000, scoped, tag = 'internal scratch']
  %s0 = inlined_call_operand.vmem [shape: bf16[512,27], index: 0, kind: input, shape index: {}]
  %s1 = inlined_call_operand.vmem [shape: bf16[27,64], index: 1, kind: input, shape index: {}]
  %s2 = inlined_call_operand.vmem [shape: f32[1,64], index: 2, kind: input, shape index: {}]
  %s3 = inlined_call_operand.vmem [shape: bf16[512,64], index: 3, kind: output, shape index: {}]
  %s4 = sld [smem:[#allocation0]]
  $region22: #{patch_embed_forward.2} parent=0
    _
  %s6 = ssub.s32 1, %s4
  %s7 = scalar_select 0, %s6, %s4
  // Predicated region
  $region2: #{patch_embed_forward.2} parent=0 // pred_check
    _
  $region3: #{patch_embed_forward.2} parent=0 // pred_check_branch
    %9 = sbr.rel (0) target = $region5
  $region4: #{patch_embed_forward.2} parent=0 // pred_region
    _
  $region5: #{patch_embed_forward.2} parent=0 // pred_fallthru
    _
  // Predicated region
  $region6: #{patch_embed_forward.2} parent=0 // pred_check
    _
  $region7: #{patch_embed_forward.2} parent=0 // pred_check_branch
    %11 = sbr.rel (0) target = $region9
  $region8: #{patch_embed_forward.2} parent=0 // pred_region
    _
  $region9: #{patch_embed_forward.2} parent=0 // pred_fallthru
    _
  // Predicated region
  $region10: #{patch_embed_forward.2} parent=0 // pred_check
    _
  $region11: #{patch_embed_forward.2} parent=0 // pred_check_branch
    %13 = sbr.rel (0) target = $region13
  $region12: #{patch_embed_forward.2} parent=0 // pred_region
    _
  $region13: #{patch_embed_forward.2} parent=0 // pred_fallthru
    _
  %v15 = vld [vmem:[%s0] sm:$0xf]
  %v16 = vld [vmem:[%s0 + $0x4] sm:$0xf]
  %v17 = vld [vmem:[%s0 + $0x8] sm:$0xf]
  %v18 = vld [vmem:[%s0 + $0xc] sm:$0xf]
  %v19 = vld [vmem:[%s0 + $0x10] sm:$0xf]
  %v20 = vld [vmem:[%s0 + $0x14] sm:$0xf]
  %v21 = vld [vmem:[%s0 + $0x18] sm:$0xf]
  %v22 = vld [vmem:[%s0 + $0x1c] sm:$0xf]
  %v23 = vld [vmem:[%s0 + $0x20] sm:$0xf]
  %v24 = vld [vmem:[%s0 + $0x24] sm:$0xf]
  %v25 = vld [vmem:[%s0 + $0x28] sm:$0xf]
  %v26 = vld [vmem:[%s0 + $0x2c] sm:$0xf]
  %v27 = vld [vmem:[%s0 + $0x30] sm:$0xf]
  %v28 = vld [vmem:[%s0 + $0x34] sm:$0xf]
  %v29 = vld [vmem:[%s0 + $0x38] sm:$0xf]
  %v30 = vld [vmem:[%s0 + $0x3c] sm:$0xf]
  %v31 = vld [vmem:[%s0 + $0x40] sm:$0xf]
  %v32 = vld [vmem:[%s0 + $0x44] sm:$0xf]
  %v33 = vld [vmem:[%s0 + $0x48] sm:$0xf]
  %v34 = vld [vmem:[%s0 + $0x4c] sm:$0xf]
  %v35 = vld [vmem:[%s0 + $0x50] sm:$0xf]
  %v36 = vld [vmem:[%s0 + $0x54] sm:$0xf]
  %v37 = vld [vmem:[%s0 + $0x58] sm:$0xf]
  %v38 = vld [vmem:[%s0 + $0x5c] sm:$0xf]
  %v39 = vld [vmem:[%s0 + $0x60] sm:$0xf]
  %v40 = vld [vmem:[%s0 + $0x64] sm:$0xf]
  %v41 = vld [vmem:[%s0 + $0x68] sm:$0xf]
  %v42 = vld [vmem:[%s0 + $0x6c] sm:$0xf]
  %v43 = vld [vmem:[%s0 + $0x70] sm:$0xf]
  %v44 = vld [vmem:[%s0 + $0x74] sm:$0xf]
  %v45 = vld [vmem:[%s0 + $0x78] sm:$0xf]
  %v46 = vld [vmem:[%s0 + $0x7c] sm:$0xf]
  %v47 = vld [vmem:[%s0 + $0x80] sm:$0xf]
  %v48 = vld [vmem:[%s0 + $0x84] sm:$0xf]
  %v49 = vld [vmem:[%s0 + $0x88] sm:$0xf]
  %v50 = vld [vmem:[%s0 + $0x8c] sm:$0xf]
  %v51 = vld [vmem:[%s0 + $0x90] sm:$0xf]
  %v52 = vld [vmem:[%s0 + $0x94] sm:$0xf]
  %v53 = vld [vmem:[%s0 + $0x98] sm:$0xf]
  %v54 = vld [vmem:[%s0 + $0x9c] sm:$0xf]
  %v55 = vld [vmem:[%s0 + $0xa0] sm:$0xf]
  %v56 = vld [vmem:[%s0 + $0xa4] sm:$0xf]
  %v57 = vld [vmem:[%s0 + $0xa8] sm:$0xf]
  %v58 = vld [vmem:[%s0 + $0xac] sm:$0xf]
  %v59 = vld [vmem:[%s0 + $0xb0] sm:$0xf]
  %v60 = vld [vmem:[%s0 + $0xb4] sm:$0xf]
  %v61 = vld [vmem:[%s0 + $0xb8] sm:$0xf]
  %v62 = vld [vmem:[%s0 + $0xbc] sm:$0xf]
  %v63 = vld [vmem:[%s0 + $0xc0] sm:$0xf]
  %v64 = vld [vmem:[%s0 + $0xc4] sm:$0xf]
  %v65 = vld [vmem:[%s0 + $0xc8] sm:$0xf]
  %v66 = vld [vmem:[%s0 + $0xcc] sm:$0xf]
  %v67 = vld [vmem:[%s0 + $0xd0] sm:$0xf]
  %v68 = vld [vmem:[%s0 + $0xd4] sm:$0xf]
  %v69 = vld [vmem:[%s0 + $0xd8] sm:$0xf]
  %v70 = vld [vmem:[%s0 + $0xdc] sm:$0xf]
  %v71 = vld [vmem:[%s0 + $0xe0] sm:$0xf]
  %v72 = vld [vmem:[%s0 + $0xe4] sm:$0xf]
  %v73 = vld [vmem:[%s0 + $0xe8] sm:$0xf]
  %v74 = vld [vmem:[%s0 + $0xec] sm:$0xf]
  %v75 = vld [vmem:[%s0 + $0xf0] sm:$0xf]
  %v76 = vld [vmem:[%s0 + $0xf4] sm:$0xf]
  %v77 = vld [vmem:[%s0 + $0xf8] sm:$0xf]
  %v78 = vld [vmem:[%s0 + $0xfc] sm:$0xf]
  %v79 = vld [vmem:[%s1] sm:$0xf]
  %v80 = vld [vmem:[%s1 + $0x4] sm:$0xf]
  %v81 = vld [vmem:[%s1 + $0x8] sm:$0xf]
  %v82 = vld [vmem:[%s1 + $0xc] sm:$0x3]
  %v83 = vld [vmem:[%s2] sm:$0x1]
  %v85 = vlaneseq
  %v86 = vshrl.u32 %v85, 7
  %v87 = vsub.s32 0, %v86
  %v88 = vrot.slane %v83, %v87
  %v154 = vunpack.c.l.b16 %v15
  %v155 = vunpack.c.l.b16 %v16
  %v156 = vunpack.c.l.b16 %v17
  %v157 = vunpack.c.l.b16 %v18
  %v158 = vunpack.c.l.b16 %v19
  %v159 = vunpack.c.l.b16 %v20
  %v160 = vunpack.c.l.b16 %v21
  %v161 = vunpack.c.l.b16 %v22
  %v162 = vunpack.c.l.b16 %v23
  %v163 = vunpack.c.l.b16 %v24
  %v164 = vunpack.c.l.b16 %v25
  %v165 = vunpack.c.l.b16 %v26
  %v166 = vunpack.c.l.b16 %v27
  %v167 = vunpack.c.l.b16 %v28
  %v168 = vunpack.c.l.b16 %v29
  %v169 = vunpack.c.l.b16 %v30
  %v170 = vunpack.c.l.b16 %v31
  %v171 = vunpack.c.l.b16 %v32
  %v172 = vunpack.c.l.b16 %v33
  %v173 = vunpack.c.l.b16 %v34
  %v174 = vunpack.c.l.b16 %v35
  %v175 = vunpack.c.l.b16 %v36
  %v176 = vunpack.c.l.b16 %v37
  %v177 = vunpack.c.l.b16 %v38
  %v178 = vunpack.c.l.b16 %v39
  %v179 = vunpack.c.l.b16 %v40
  %v180 = vunpack.c.l.b16 %v41
  %v181 = vunpack.c.l.b16 %v42
  %v182 = vunpack.c.l.b16 %v43
  %v183 = vunpack.c.l.b16 %v44
  %v184 = vunpack.c.l.b16 %v45
  %v185 = vunpack.c.l.b16 %v46
  %v186 = vunpack.c.l.b16 %v47
  %v187 = vunpack.c.l.b16 %v48
  %v188 = vunpack.c.l.b16 %v49
  %v189 = vunpack.c.l.b16 %v50
  %v190 = vunpack.c.l.b16 %v51
  %v191 = vunpack.c.l.b16 %v52
  %v192 = vunpack.c.l.b16 %v53
  %v193 = vunpack.c.l.b16 %v54
  %v194 = vunpack.c.l.b16 %v55
  %v195 = vunpack.c.l.b16 %v56
  %v196 = vunpack.c.l.b16 %v57
  %v197 = vunpack.c.l.b16 %v58
  %v198 = vunpack.c.l.b16 %v59
  %v199 = vunpack.c.l.b16 %v60
  %v200 = vunpack.c.l.b16 %v61
  %v201 = vunpack.c.l.b16 %v62
  %v202 = vunpack.c.l.b16 %v63
  %v203 = vunpack.c.l.b16 %v64
  %v204 = vunpack.c.l.b16 %v65
  %v205 = vunpack.c.l.b16 %v66
  %v206 = vunpack.c.l.b16 %v67
  %v207 = vunpack.c.l.b16 %v68
  %v208 = vunpack.c.l.b16 %v69
  %v209 = vunpack.c.l.b16 %v70
  %v210 = vunpack.c.l.b16 %v71
  %v211 = vunpack.c.l.b16 %v72
  %v212 = vunpack.c.l.b16 %v73
  %v213 = vunpack.c.l.b16 %v74
  %v214 = vunpack.c.l.b16 %v75
  %v215 = vunpack.c.l.b16 %v76
  %v216 = vunpack.c.l.b16 %v77
  %v217 = vunpack.c.l.b16 %v78
  %v218 = vpack.c.b16 %v155, %v154
  %v219 = vpack.c.b16 %v157, %v156
  %v220 = vpack.c.b16 %v159, %v158
  %v221 = vpack.c.b16 %v161, %v160
  %v222 = vpack.c.b16 %v163, %v162
  %v223 = vpack.c.b16 %v165, %v164
  %v224 = vpack.c.b16 %v167, %v166
  %v225 = vpack.c.b16 %v169, %v168
  %v226 = vpack.c.b16 %v171, %v170
  %v227 = vpack.c.b16 %v173, %v172
  %v228 = vpack.c.b16 %v175, %v174
  %v229 = vpack.c.b16 %v177, %v176
  %v230 = vpack.c.b16 %v179, %v178
  %v231 = vpack.c.b16 %v181, %v180
  %v232 = vpack.c.b16 %v183, %v182
  %v233 = vpack.c.b16 %v185, %v184
  %v234 = vpack.c.b16 %v187, %v186
  %v235 = vpack.c.b16 %v189, %v188
  %v236 = vpack.c.b16 %v191, %v190
  %v237 = vpack.c.b16 %v193, %v192
  %v238 = vpack.c.b16 %v195, %v194
  %v239 = vpack.c.b16 %v197, %v196
  %v240 = vpack.c.b16 %v199, %v198
  %v241 = vpack.c.b16 %v201, %v200
  %v242 = vpack.c.b16 %v203, %v202
  %v243 = vpack.c.b16 %v205, %v204
  %v244 = vpack.c.b16 %v207, %v206
  %v245 = vpack.c.b16 %v209, %v208
  %v246 = vpack.c.b16 %v211, %v210
  %v247 = vpack.c.b16 %v213, %v212
  %v248 = vpack.c.b16 %v215, %v214
  %v249 = vpack.c.b16 %v217, %v216
  %v254 = vunpack.c.l.b16 %v79
  %v255 = vunpack.c.l.b16 %v80
  %v256 = vunpack.c.l.b16 %v81
  %v257 = vunpack.c.l.b16 %v82
  %v258 = vpack.c.b16 %v255, %v254
  %v259 = vpack.c.b16 %v257, %v256
  %vm261 = vcmask 220160
  %v263 = vsel %vm261, %v218, 0
  %v266 = vsel %vm261, %v219, 0
  %v269 = vsel %vm261, %v220, 0
  %v272 = vsel %vm261, %v221, 0
  %v275 = vsel %vm261, %v222, 0
  %v278 = vsel %vm261, %v223, 0
  %v281 = vsel %vm261, %v224, 0
  %v284 = vsel %vm261, %v225, 0
  %v287 = vsel %vm261, %v226, 0
  %v290 = vsel %vm261, %v227, 0
  %v293 = vsel %vm261, %v228, 0
  %v296 = vsel %vm261, %v229, 0
  %v299 = vsel %vm261, %v230, 0
  %v302 = vsel %vm261, %v231, 0
  %v305 = vsel %vm261, %v232, 0
  %v308 = vsel %vm261, %v233, 0
  %v311 = vsel %vm261, %v234, 0
  %v314 = vsel %vm261, %v235, 0
  %v317 = vsel %vm261, %v236, 0
  %v320 = vsel %vm261, %v237, 0
  %v323 = vsel %vm261, %v238, 0
  %v326 = vsel %vm261, %v239, 0
  %v329 = vsel %vm261, %v240, 0
  %v332 = vsel %vm261, %v241, 0
  %v335 = vsel %vm261, %v242, 0
  %v338 = vsel %vm261, %v243, 0
  %v341 = vsel %vm261, %v244, 0
  %v344 = vsel %vm261, %v245, 0
  %v347 = vsel %vm261, %v246, 0
  %v350 = vsel %vm261, %v247, 0
  %v353 = vsel %vm261, %v248, 0
  %v356 = vsel %vm261, %v249, 0
  %vm358 = vcmask 1044480
  %vm359 = vcmask 1045504
  %v360 = vsel %vm358, 4294967295, 65535
  %v361 = vsel %vm359, %v360, 0
  %v363 = vand.u32 %v259, %v361
  %365 = vmatprep.subr.bf16.mxu0 0
  %366 = vmatpush1.bf16.msra.mxu0 0
  %367 = vmatprep.subr.bf16.mxu0 0
  %368 = vmatpush1.bf16.msra.mxu0 0
  %369 = vmatprep.subr.bf16.mxu0 0
  %370 = vmatpush1.bf16.msra.mxu0 0
  %371 = vmatprep.subr.bf16.mxu0 0
  %372 = vmatpush1.bf16.msra.mxu0 0
  %373 = vmatprep.subr.bf16.mxu0 0
  %374 = vmatpush1.bf16.msra.mxu0 0
  %375 = vmatprep.subr.bf16.mxu0 0
  %376 = vmatpush1.bf16.msra.mxu0 0
  %377 = vmatprep.subr.bf16.mxu0 0
  %378 = vmatpush1.bf16.msra.mxu0 %v363
  %379 = vmatprep.subr.bf16.mxu0 0
  %380 = vmatpush1.bf16.msra.mxu0 %v258
  %381 = vmatprep.subr.bf16.mxu0 0
  %382 = vmatpush2.bf16.msra.mxu0 0
  %383 = vmatprep.subr.bf16.mxu0 0
  %384 = vmatpush2.bf16.msra.mxu0 0
  %385 = vmatprep.subr.bf16.mxu0 0
  %386 = vmatpush2.bf16.msra.mxu0 0
  %387 = vmatprep.subr.bf16.mxu0 0
  %388 = vmatpush2.bf16.msra.mxu0 0
  %389 = vmatprep.subr.bf16.mxu0 0
  %390 = vmatpush2.bf16.msra.mxu0 0
  %391 = vmatprep.subr.bf16.mxu0 0
  %392 = vmatpush2.bf16.msra.mxu0 0
  %393 = vmatprep.subr.bf16.mxu0 0
  %394 = vmatpush2.bf16.msra.mxu0 0
  %395 = vmatprep.subr.bf16.mxu0 0
  %396 = vmatpush2.bf16.msra.mxu0 0
  %397 = vmatprep.mubr.bf16.mxu0 0
  %398 = vmatmul.mubr.bf16.gmra.mxu0 %v263
  %v399 = vpop.f32.mrf.mxu0
  %v400 = vadd.f32 %v88, %v399
  %v401 = vpop.f32.mrf.mxu0
  %v402 = vpop.f32.mrf.mxu0
  %v403 = vadd.f32 %v88, %v402
  %v404 = vpop.f32.mrf.mxu0
  %405 = vmatprep.mubr.bf16.mxu0 0
  %406 = vmatmul.mubr.bf16.gmra.mxu0 %v266
  %v407 = vpop.f32.mrf.mxu0
  %v408 = vadd.f32 %v88, %v407
  %v409 = vpop.f32.mrf.mxu0
  %v410 = vpop.f32.mrf.mxu0
  %v411 = vadd.f32 %v88, %v410
  %v412 = vpop.f32.mrf.mxu0
  %413 = vmatprep.mubr.bf16.mxu0 0
  %414 = vmatmul.mubr.bf16.gmra.mxu0 %v269
  %v415 = vpop.f32.mrf.mxu0
  %v416 = vadd.f32 %v88, %v415
  %v417 = vpop.f32.mrf.mxu0
  %v418 = vpop.f32.mrf.mxu0
  %v419 = vadd.f32 %v88, %v418
  %v420 = vpop.f32.mrf.mxu0
  %421 = vmatprep.mubr.bf16.mxu0 0
  %422 = vmatmul.mubr.bf16.gmra.mxu0 %v272
  %v423 = vpop.f32.mrf.mxu0
  %v424 = vadd.f32 %v88, %v423
  %v425 = vpop.f32.mrf.mxu0
  %v426 = vpop.f32.mrf.mxu0
  %v427 = vadd.f32 %v88, %v426
  %v428 = vpop.f32.mrf.mxu0
  %429 = vmatprep.mubr.bf16.mxu0 0
  %430 = vmatmul.mubr.bf16.gmra.mxu0 %v275
  %v431 = vpop.f32.mrf.mxu0
  %v432 = vadd.f32 %v88, %v431
  %v433 = vpop.f32.mrf.mxu0
  %v434 = vpop.f32.mrf.mxu0
  %v435 = vadd.f32 %v88, %v434
  %v436 = vpop.f32.mrf.mxu0
  %437 = vmatprep.mubr.bf16.mxu0 0
  %438 = vmatmul.mubr.bf16.gmra.mxu0 %v278
  %v439 = vpop.f32.mrf.mxu0
  %v440 = vadd.f32 %v88, %v439
  %v441 = vpop.f32.mrf.mxu0
  %v442 = vpop.f32.mrf.mxu0
  %v443 = vadd.f32 %v88, %v442
  %v444 = vpop.f32.mrf.mxu0
  %445 = vmatprep.mubr.bf16.mxu0 0
  %446 = vmatmul.mubr.bf16.gmra.mxu0 %v281
  %v447 = vpop.f32.mrf.mxu0
  %v448 = vadd.f32 %v88, %v447
  %v449 = vpop.f32.mrf.mxu0
  %v450 = vpop.f32.mrf.mxu0
  %v451 = vadd.f32 %v88, %v450
  %v452 = vpop.f32.mrf.mxu0
  %453 = vmatprep.mubr.bf16.mxu0 0
  %454 = vmatmul.mubr.bf16.gmra.mxu0 %v284
  %v455 = vpop.f32.mrf.mxu0
  %v456 = vadd.f32 %v88, %v455
  %v457 = vpop.f32.mrf.mxu0
  %v458 = vpop.f32.mrf.mxu0
  %v459 = vadd.f32 %v88, %v458
  %v460 = vpop.f32.mrf.mxu0
  %461 = vmatprep.mubr.bf16.mxu0 0
  %462 = vmatmul.mubr.bf16.gmra.mxu0 %v287
  %v463 = vpop.f32.mrf.mxu0
  %v464 = vadd.f32 %v88, %v463
  %v465 = vpop.f32.mrf.mxu0
  %v466 = vpop.f32.mrf.mxu0
  %v467 = vadd.f32 %v88, %v466
  %v468 = vpop.f32.mrf.mxu0
  %469 = vmatprep.mubr.bf16.mxu0 0
  %470 = vmatmul.mubr.bf16.gmra.mxu0 %v290
  %v471 = vpop.f32.mrf.mxu0
  %v472 = vadd.f32 %v88, %v471
  %v473 = vpop.f32.mrf.mxu0
  %v474 = vpop.f32.mrf.mxu0
  %v475 = vadd.f32 %v88, %v474
  %v476 = vpop.f32.mrf.mxu0
  %477 = vmatprep.mubr.bf16.mxu0 0
  %478 = vmatmul.mubr.bf16.gmra.mxu0 %v293
  %v479 = vpop.f32.mrf.mxu0
  %v480 = vadd.f32 %v88, %v479
  %v481 = vpop.f32.mrf.mxu0
  %v482 = vpop.f32.mrf.mxu0
  %v483 = vadd.f32 %v88, %v482
  %v484 = vpop.f32.mrf.mxu0
  %485 = vmatprep.mubr.bf16.mxu0 0
  %486 = vmatmul.mubr.bf16.gmra.mxu0 %v296
  %v487 = vpop.f32.mrf.mxu0
  %v488 = vadd.f32 %v88, %v487
  %v489 = vpop.f32.mrf.mxu0
  %v490 = vpop.f32.mrf.mxu0
  %v491 = vadd.f32 %v88, %v490
  %v492 = vpop.f32.mrf.mxu0
  %493 = vmatprep.mubr.bf16.mxu0 0
  %494 = vmatmul.mubr.bf16.gmra.mxu0 %v299
  %v495 = vpop.f32.mrf.mxu0
  %v496 = vadd.f32 %v88, %v495
  %v497 = vpop.f32.mrf.mxu0
  %v498 = vpop.f32.mrf.mxu0
  %v499 = vadd.f32 %v88, %v498
  %v500 = vpop.f32.mrf.mxu0
  %501 = vmatprep.mubr.bf16.mxu0 0
  %502 = vmatmul.mubr.bf16.gmra.mxu0 %v302
  %v503 = vpop.f32.mrf.mxu0
  %v504 = vadd.f32 %v88, %v503
  %v505 = vpop.f32.mrf.mxu0
  %v506 = vpop.f32.mrf.mxu0
  %v507 = vadd.f32 %v88, %v506
  %v508 = vpop.f32.mrf.mxu0
  %509 = vmatprep.mubr.bf16.mxu0 0
  %510 = vmatmul.mubr.bf16.gmra.mxu0 %v305
  %v511 = vpop.f32.mrf.mxu0
  %v512 = vadd.f32 %v88, %v511
  %v513 = vpop.f32.mrf.mxu0
  %v514 = vpop.f32.mrf.mxu0
  %v515 = vadd.f32 %v88, %v514
  %v516 = vpop.f32.mrf.mxu0
  %517 = vmatprep.mubr.bf16.mxu0 0
  %518 = vmatmul.mubr.bf16.gmra.mxu0 %v308
  %v519 = vpop.f32.mrf.mxu0
  %v520 = vadd.f32 %v88, %v519
  %v521 = vpop.f32.mrf.mxu0
  %v522 = vpop.f32.mrf.mxu0
  %v523 = vadd.f32 %v88, %v522
  %v524 = vpop.f32.mrf.mxu0
  %525 = vmatprep.mubr.bf16.mxu0 0
  %526 = vmatmul.mubr.bf16.gmra.mxu0 %v311
  %v527 = vpop.f32.mrf.mxu0
  %v528 = vadd.f32 %v88, %v527
  %v529 = vpop.f32.mrf.mxu0
  %v530 = vpop.f32.mrf.mxu0
  %v531 = vadd.f32 %v88, %v530
  %v532 = vpop.f32.mrf.mxu0
  %533 = vmatprep.mubr.bf16.mxu0 0
  %534 = vmatmul.mubr.bf16.gmra.mxu0 %v314
  %v535 = vpop.f32.mrf.mxu0
  %v536 = vadd.f32 %v88, %v535
  %v537 = vpop.f32.mrf.mxu0
  %v538 = vpop.f32.mrf.mxu0
  %v539 = vadd.f32 %v88, %v538
  %v540 = vpop.f32.mrf.mxu0
  %541 = vmatprep.mubr.bf16.mxu0 0
  %542 = vmatmul.mubr.bf16.gmra.mxu0 %v317
  %v543 = vpop.f32.mrf.mxu0
  %v544 = vadd.f32 %v88, %v543
  %v545 = vpop.f32.mrf.mxu0
  %v546 = vpop.f32.mrf.mxu0
  %v547 = vadd.f32 %v88, %v546
  %v548 = vpop.f32.mrf.mxu0
  %549 = vmatprep.mubr.bf16.mxu0 0
  %550 = vmatmul.mubr.bf16.gmra.mxu0 %v320
  %v551 = vpop.f32.mrf.mxu0
  %v552 = vadd.f32 %v88, %v551
  %v553 = vpop.f32.mrf.mxu0
  %v554 = vpop.f32.mrf.mxu0
  %v555 = vadd.f32 %v88, %v554
  %v556 = vpop.f32.mrf.mxu0
  %557 = vmatprep.mubr.bf16.mxu0 0
  %558 = vmatmul.mubr.bf16.gmra.mxu0 %v323
  %v559 = vpop.f32.mrf.mxu0
  %v560 = vadd.f32 %v88, %v559
  %v561 = vpop.f32.mrf.mxu0
  %v562 = vpop.f32.mrf.mxu0
  %v563 = vadd.f32 %v88, %v562
  %v564 = vpop.f32.mrf.mxu0
  %565 = vmatprep.mubr.bf16.mxu0 0
  %566 = vmatmul.mubr.bf16.gmra.mxu0 %v326
  %v567 = vpop.f32.mrf.mxu0
  %v568 = vadd.f32 %v88, %v567
  %v569 = vpop.f32.mrf.mxu0
  %v570 = vpop.f32.mrf.mxu0
  %v571 = vadd.f32 %v88, %v570
  %v572 = vpop.f32.mrf.mxu0
  %573 = vmatprep.mubr.bf16.mxu0 0
  %574 = vmatmul.mubr.bf16.gmra.mxu0 %v329
  %v575 = vpop.f32.mrf.mxu0
  %v576 = vadd.f32 %v88, %v575
  %v577 = vpop.f32.mrf.mxu0
  %v578 = vpop.f32.mrf.mxu0
  %v579 = vadd.f32 %v88, %v578
  %v580 = vpop.f32.mrf.mxu0
  %581 = vmatprep.mubr.bf16.mxu0 0
  %582 = vmatmul.mubr.bf16.gmra.mxu0 %v332
  %v583 = vpop.f32.mrf.mxu0
  %v584 = vadd.f32 %v88, %v583
  %v585 = vpop.f32.mrf.mxu0
  %v586 = vpop.f32.mrf.mxu0
  %v587 = vadd.f32 %v88, %v586
  %v588 = vpop.f32.mrf.mxu0
  %589 = vmatprep.mubr.bf16.mxu0 0
  %590 = vmatmul.mubr.bf16.gmra.mxu0 %v335
  %v591 = vpop.f32.mrf.mxu0
  %v592 = vadd.f32 %v88, %v591
  %v593 = vpop.f32.mrf.mxu0
  %v594 = vpop.f32.mrf.mxu0
  %v595 = vadd.f32 %v88, %v594
  %v596 = vpop.f32.mrf.mxu0
  %597 = vmatprep.mubr.bf16.mxu0 0
  %598 = vmatmul.mubr.bf16.gmra.mxu0 %v338
  %v599 = vpop.f32.mrf.mxu0
  %v600 = vadd.f32 %v88, %v599
  %v601 = vpop.f32.mrf.mxu0
  %v602 = vpop.f32.mrf.mxu0
  %v603 = vadd.f32 %v88, %v602
  %v604 = vpop.f32.mrf.mxu0
  %605 = vmatprep.mubr.bf16.mxu0 0
  %606 = vmatmul.mubr.bf16.gmra.mxu0 %v341
  %v607 = vpop.f32.mrf.mxu0
  %v608 = vadd.f32 %v88, %v607
  %v609 = vpop.f32.mrf.mxu0
  %v610 = vpop.f32.mrf.mxu0
  %v611 = vadd.f32 %v88, %v610
  %v612 = vpop.f32.mrf.mxu0
  %613 = vmatprep.mubr.bf16.mxu0 0
  %614 = vmatmul.mubr.bf16.gmra.mxu0 %v344
  %v615 = vpop.f32.mrf.mxu0
  %v616 = vadd.f32 %v88, %v615
  %v617 = vpop.f32.mrf.mxu0
  %v618 = vpop.f32.mrf.mxu0
  %v619 = vadd.f32 %v88, %v618
  %v620 = vpop.f32.mrf.mxu0
  %621 = vmatprep.mubr.bf16.mxu0 0
  %622 = vmatmul.mubr.bf16.gmra.mxu0 %v347
  %v623 = vpop.f32.mrf.mxu0
  %v624 = vadd.f32 %v88, %v623
  %v625 = vpop.f32.mrf.mxu0
  %v626 = vpop.f32.mrf.mxu0
  %v627 = vadd.f32 %v88, %v626
  %v628 = vpop.f32.mrf.mxu0
  %629 = vmatprep.mubr.bf16.mxu0 0
  %630 = vmatmul.mubr.bf16.gmra.mxu0 %v350
  %v631 = vpop.f32.mrf.mxu0
  %v632 = vadd.f32 %v88, %v631
  %v633 = vpop.f32.mrf.mxu0
  %v634 = vpop.f32.mrf.mxu0
  %v635 = vadd.f32 %v88, %v634
  %v636 = vpop.f32.mrf.mxu0
  %637 = vmatprep.mubr.bf16.mxu0 0
  %638 = vmatmul.mubr.bf16.gmra.mxu0 %v353
  %v639 = vpop.f32.mrf.mxu0
  %v640 = vadd.f32 %v88, %v639
  %v641 = vpop.f32.mrf.mxu0
  %v642 = vpop.f32.mrf.mxu0
  %v643 = vadd.f32 %v88, %v642
  %v644 = vpop.f32.mrf.mxu0
  %645 = vmatprep.mubr.bf16.mxu0 0
  %646 = vmatmul.mubr.bf16.gmra.mxu0 %v356
  %v647 = vpop.f32.mrf.mxu0
  %v648 = vadd.f32 %v88, %v647
  %v649 = vpop.f32.mrf.mxu0
  %v650 = vpop.f32.mrf.mxu0
  %v651 = vadd.f32 %v88, %v650
  %v652 = vpop.f32.mrf.mxu0
  %653 = vdwg.mxu0
  %v654 = vmax.f32 %v400, 0.0
  %v655 = vmax.f32 %v403, 0.0
  %v656 = vmax.f32 %v408, 0.0
  %v657 = vmax.f32 %v411, 0.0
  %v658 = vmax.f32 %v416, 0.0
  %v659 = vmax.f32 %v419, 0.0
  %v660 = vmax.f32 %v424, 0.0
  %v661 = vmax.f32 %v427, 0.0
  %v662 = vmax.f32 %v432, 0.0
  %v663 = vmax.f32 %v435, 0.0
  %v664 = vmax.f32 %v440, 0.0
  %v665 = vmax.f32 %v443, 0.0
  %v666 = vmax.f32 %v448, 0.0
  %v667 = vmax.f32 %v451, 0.0
  %v668 = vmax.f32 %v456, 0.0
  %v669 = vmax.f32 %v459, 0.0
  %v670 = vmax.f32 %v464, 0.0
  %v671 = vmax.f32 %v467, 0.0
  %v672 = vmax.f32 %v472, 0.0
  %v673 = vmax.f32 %v475, 0.0
  %v674 = vmax.f32 %v480, 0.0
  %v675 = vmax.f32 %v483, 0.0
  %v676 = vmax.f32 %v488, 0.0
  %v677 = vmax.f32 %v491, 0.0
  %v678 = vmax.f32 %v496, 0.0
  %v679 = vmax.f32 %v499, 0.0
  %v680 = vmax.f32 %v504, 0.0
  %v681 = vmax.f32 %v507, 0.0
  %v682 = vmax.f32 %v512, 0.0
  %v683 = vmax.f32 %v515, 0.0
  %v684 = vmax.f32 %v520, 0.0
  %v685 = vmax.f32 %v523, 0.0
  %v686 = vmax.f32 %v528, 0.0
  %v687 = vmax.f32 %v531, 0.0
  %v688 = vmax.f32 %v536, 0.0
  %v689 = vmax.f32 %v539, 0.0
  %v690 = vmax.f32 %v544, 0.0
  %v691 = vmax.f32 %v547, 0.0
  %v692 = vmax.f32 %v552, 0.0
  %v693 = vmax.f32 %v555, 0.0
  %v694 = vmax.f32 %v560, 0.0
  %v695 = vmax.f32 %v563, 0.0
  %v696 = vmax.f32 %v568, 0.0
  %v697 = vmax.f32 %v571, 0.0
  %v698 = vmax.f32 %v576, 0.0
  %v699 = vmax.f32 %v579, 0.0
  %v700 = vmax.f32 %v584, 0.0
  %v701 = vmax.f32 %v587, 0.0
  %v702 = vmax.f32 %v592, 0.0
  %v703 = vmax.f32 %v595, 0.0
  %v704 = vmax.f32 %v600, 0.0
  %v705 = vmax.f32 %v603, 0.0
  %v706 = vmax.f32 %v608, 0.0
  %v707 = vmax.f32 %v611, 0.0
  %v708 = vmax.f32 %v616, 0.0
  %v709 = vmax.f32 %v619, 0.0
  %v710 = vmax.f32 %v624, 0.0
  %v711 = vmax.f32 %v627, 0.0
  %v712 = vmax.f32 %v632, 0.0
  %v713 = vmax.f32 %v635, 0.0
  %v714 = vmax.f32 %v640, 0.0
  %v715 = vmax.f32 %v643, 0.0
  %v716 = vmax.f32 %v648, 0.0
  %v717 = vmax.f32 %v651, 0.0
  %v718 = vpack.c.bf16 %v655, %v654
  %v719 = vpack.c.bf16 %v657, %v656
  %v720 = vpack.c.bf16 %v659, %v658
  %v721 = vpack.c.bf16 %v661, %v660
  %v722 = vpack.c.bf16 %v663, %v662
  %v723 = vpack.c.bf16 %v665, %v664
  %v724 = vpack.c.bf16 %v667, %v666
  %v725 = vpack.c.bf16 %v669, %v668
  %v726 = vpack.c.bf16 %v671, %v670
  %v727 = vpack.c.bf16 %v673, %v672
  %v728 = vpack.c.bf16 %v675, %v674
  %v729 = vpack.c.bf16 %v677, %v676
  %v730 = vpack.c.bf16 %v679, %v678
  %v731 = vpack.c.bf16 %v681, %v680
  %v732 = vpack.c.bf16 %v683, %v682
  %v733 = vpack.c.bf16 %v685, %v684
  %v734 = vpack.c.bf16 %v687, %v686
  %v735 = vpack.c.bf16 %v689, %v688
  %v736 = vpack.c.bf16 %v691, %v690
  %v737 = vpack.c.bf16 %v693, %v692
  %v738 = vpack.c.bf16 %v695, %v694
  %v739 = vpack.c.bf16 %v697, %v696
  %v740 = vpack.c.bf16 %v699, %v698
  %v741 = vpack.c.bf16 %v701, %v700
  %v742 = vpack.c.bf16 %v703, %v702
  %v743 = vpack.c.bf16 %v705, %v704
  %v744 = vpack.c.bf16 %v707, %v706
  %v745 = vpack.c.bf16 %v709, %v708
  %v746 = vpack.c.bf16 %v711, %v710
  %v747 = vpack.c.bf16 %v713, %v712
  %v748 = vpack.c.bf16 %v715, %v714
  %v749 = vpack.c.bf16 %v717, %v716
  %v782 = vunpack.c.l.b16 %v718
  %v783 = vunpack.c.h.b16 %v718
  %v784 = vunpack.c.l.b16 %v719
  %v785 = vunpack.c.h.b16 %v719
  %v786 = vunpack.c.l.b16 %v720
  %v787 = vunpack.c.h.b16 %v720
  %v788 = vunpack.c.l.b16 %v721
  %v789 = vunpack.c.h.b16 %v721
  %v790 = vunpack.c.l.b16 %v722
  %v791 = vunpack.c.h.b16 %v722
  %v792 = vunpack.c.l.b16 %v723
  %v793 = vunpack.c.h.b16 %v723
  %v794 = vunpack.c.l.b16 %v724
  %v795 = vunpack.c.h.b16 %v724
  %v796 = vunpack.c.l.b16 %v725
  %v797 = vunpack.c.h.b16 %v725
  %v798 = vunpack.c.l.b16 %v726
  %v799 = vunpack.c.h.b16 %v726
  %v800 = vunpack.c.l.b16 %v727
  %v801 = vunpack.c.h.b16 %v727
  %v802 = vunpack.c.l.b16 %v728
  %v803 = vunpack.c.h.b16 %v728
  %v804 = vunpack.c.l.b16 %v729
  %v805 = vunpack.c.h.b16 %v729
  %v806 = vunpack.c.l.b16 %v730
  %v807 = vunpack.c.h.b16 %v730
  %v808 = vunpack.c.l.b16 %v731
  %v809 = vunpack.c.h.b16 %v731
  %v810 = vunpack.c.l.b16 %v732
  %v811 = vunpack.c.h.b16 %v732
  %v812 = vunpack.c.l.b16 %v733
  %v813 = vunpack.c.h.b16 %v733
  %v814 = vunpack.c.l.b16 %v734
  %v815 = vunpack.c.h.b16 %v734
  %v816 = vunpack.c.l.b16 %v735
  %v817 = vunpack.c.h.b16 %v735
  %v818 = vunpack.c.l.b16 %v736
  %v819 = vunpack.c.h.b16 %v736
  %v820 = vunpack.c.l.b16 %v737
  %v821 = vunpack.c.h.b16 %v737
  %v822 = vunpack.c.l.b16 %v738
  %v823 = vunpack.c.h.b16 %v738
  %v824 = vunpack.c.l.b16 %v739
  %v825 = vunpack.c.h.b16 %v739
  %v826 = vunpack.c.l.b16 %v740
  %v827 = vunpack.c.h.b16 %v740
  %v828 = vunpack.c.l.b16 %v741
  %v829 = vunpack.c.h.b16 %v741
  %v830 = vunpack.c.l.b16 %v742
  %v831 = vunpack.c.h.b16 %v742
  %v832 = vunpack.c.l.b16 %v743
  %v833 = vunpack.c.h.b16 %v743
  %v834 = vunpack.c.l.b16 %v744
  %v835 = vunpack.c.h.b16 %v744
  %v836 = vunpack.c.l.b16 %v745
  %v837 = vunpack.c.h.b16 %v745
  %v838 = vunpack.c.l.b16 %v746
  %v839 = vunpack.c.h.b16 %v746
  %v840 = vunpack.c.l.b16 %v747
  %v841 = vunpack.c.h.b16 %v747
  %v842 = vunpack.c.l.b16 %v748
  %v843 = vunpack.c.h.b16 %v748
  %v844 = vunpack.c.l.b16 %v749
  %v845 = vunpack.c.h.b16 %v749
  %v846 = vpack.c.b16 %v782, %v782
  %v847 = vpack.c.b16 %v783, %v783
  %v848 = vpack.c.b16 %v784, %v784
  %v849 = vpack.c.b16 %v785, %v785
  %v850 = vpack.c.b16 %v786, %v786
  %v851 = vpack.c.b16 %v787, %v787
  %v852 = vpack.c.b16 %v788, %v788
  %v853 = vpack.c.b16 %v789, %v789
  %v854 = vpack.c.b16 %v790, %v790
  %v855 = vpack.c.b16 %v791, %v791
  %v856 = vpack.c.b16 %v792, %v792
  %v857 = vpack.c.b16 %v793, %v793
  %v858 = vpack.c.b16 %v794, %v794
  %v859 = vpack.c.b16 %v795, %v795
  %v860 = vpack.c.b16 %v796, %v796
  %v861 = vpack.c.b16 %v797, %v797
  %v862 = vpack.c.b16 %v798, %v798
  %v863 = vpack.c.b16 %v799, %v799
  %v864 = vpack.c.b16 %v800, %v800
  %v865 = vpack.c.b16 %v801, %v801
  %v866 = vpack.c.b16 %v802, %v802
  %v867 = vpack.c.b16 %v803, %v803
  %v868 = vpack.c.b16 %v804, %v804
  %v869 = vpack.c.b16 %v805, %v805
  %v870 = vpack.c.b16 %v806, %v806
  %v871 = vpack.c.b16 %v807, %v807
  %v872 = vpack.c.b16 %v808, %v808
  %v873 = vpack.c.b16 %v809, %v809
  %v874 = vpack.c.b16 %v810, %v810
  %v875 = vpack.c.b16 %v811, %v811
  %v876 = vpack.c.b16 %v812, %v812
  %v877 = vpack.c.b16 %v813, %v813
  %v878 = vpack.c.b16 %v814, %v814
  %v879 = vpack.c.b16 %v815, %v815
  %v880 = vpack.c.b16 %v816, %v816
  %v881 = vpack.c.b16 %v817, %v817
  %v882 = vpack.c.b16 %v818, %v818
  %v883 = vpack.c.b16 %v819, %v819
  %v884 = vpack.c.b16 %v820, %v820
  %v885 = vpack.c.b16 %v821, %v821
  %v886 = vpack.c.b16 %v822, %v822
  %v887 = vpack.c.b16 %v823, %v823
  %v888 = vpack.c.b16 %v824, %v824
  %v889 = vpack.c.b16 %v825, %v825
  %v890 = vpack.c.b16 %v826, %v826
  %v891 = vpack.c.b16 %v827, %v827
  %v892 = vpack.c.b16 %v828, %v828
  %v893 = vpack.c.b16 %v829, %v829
  %v894 = vpack.c.b16 %v830, %v830
  %v895 = vpack.c.b16 %v831, %v831
  %v896 = vpack.c.b16 %v832, %v832
  %v897 = vpack.c.b16 %v833, %v833
  %v898 = vpack.c.b16 %v834, %v834
  %v899 = vpack.c.b16 %v835, %v835
  %v900 = vpack.c.b16 %v836, %v836
  %v901 = vpack.c.b16 %v837, %v837
  %v902 = vpack.c.b16 %v838, %v838
  %v903 = vpack.c.b16 %v839, %v839
  %v904 = vpack.c.b16 %v840, %v840
  %v905 = vpack.c.b16 %v841, %v841
  %v906 = vpack.c.b16 %v842, %v842
  %v907 = vpack.c.b16 %v843, %v843
  %v908 = vpack.c.b16 %v844, %v844
  %v909 = vpack.c.b16 %v845, %v845
  %vm974 = vcmask 519168
  %975 = vst.msk [vmem:[%s3] sm:$0xf] %vm974, %v846
  %976 = vst.msk [vmem:[%s3 + $0x4] sm:$0xf] %vm974, %v847
  %977 = vst.msk [vmem:[%s3 + $0x8] sm:$0xf] %vm974, %v848
  %978 = vst.msk [vmem:[%s3 + $0xc] sm:$0xf] %vm974, %v849
  %979 = vst.msk [vmem:[%s3 + $0x10] sm:$0xf] %vm974, %v850
  %980 = vst.msk [vmem:[%s3 + $0x14] sm:$0xf] %vm974, %v851
  %981 = vst.msk [vmem:[%s3 + $0x18] sm:$0xf] %vm974, %v852
  %982 = vst.msk [vmem:[%s3 + $0x1c] sm:$0xf] %vm974, %v853
  %983 = vst.msk [vmem:[%s3 + $0x20] sm:$0xf] %vm974, %v854
  %984 = vst.msk [vmem:[%s3 + $0x24] sm:$0xf] %vm974, %v855
  %985 = vst.msk [vmem:[%s3 + $0x28] sm:$0xf] %vm974, %v856
  %986 = vst.msk [vmem:[%s3 + $0x2c] sm:$0xf] %vm974, %v857
  %987 = vst.msk [vmem:[%s3 + $0x30] sm:$0xf] %vm974, %v858
  %988 = vst.msk [vmem:[%s3 + $0x34] sm:$0xf] %vm974, %v859
  %989 = vst.msk [vmem:[%s3 + $0x38] sm:$0xf] %vm974, %v860
  %990 = vst.msk [vmem:[%s3 + $0x3c] sm:$0xf] %vm974, %v861
  %991 = vst.msk [vmem:[%s3 + $0x40] sm:$0xf] %vm974, %v862
  %992 = vst.msk [vmem:[%s3 + $0x44] sm:$0xf] %vm974, %v863
  %993 = vst.msk [vmem:[%s3 + $0x48] sm:$0xf] %vm974, %v864
  %994 = vst.msk [vmem:[%s3 + $0x4c] sm:$0xf] %vm974, %v865
  %995 = vst.msk [vmem:[%s3 + $0x50] sm:$0xf] %vm974, %v866
  %996 = vst.msk [vmem:[%s3 + $0x54] sm:$0xf] %vm974, %v867
  %997 = vst.msk [vmem:[%s3 + $0x58] sm:$0xf] %vm974, %v868
  %998 = vst.msk [vmem:[%s3 + $0x5c] sm:$0xf] %vm974, %v869
  %999 = vst.msk [vmem:[%s3 + $0x60] sm:$0xf] %vm974, %v870
  %1000 = vst.msk [vmem:[%s3 + $0x64] sm:$0xf] %vm974, %v871
  %1001 = vst.msk [vmem:[%s3 + $0x68] sm:$0xf] %vm974, %v872
  %1002 = vst.msk [vmem:[%s3 + $0x6c] sm:$0xf] %vm974, %v873
  %1003 = vst.msk [vmem:[%s3 + $0x70] sm:$0xf] %vm974, %v874
  %1004 = vst.msk [vmem:[%s3 + $0x74] sm:$0xf] %vm974, %v875
  %1005 = vst.msk [vmem:[%s3 + $0x78] sm:$0xf] %vm974, %v876
  %1006 = vst.msk [vmem:[%s3 + $0x7c] sm:$0xf] %vm974, %v877
  %1007 = vst.msk [vmem:[%s3 + $0x80] sm:$0xf] %vm974, %v878
  %1008 = vst.msk [vmem:[%s3 + $0x84] sm:$0xf] %vm974, %v879
  %1009 = vst.msk [vmem:[%s3 + $0x88] sm:$0xf] %vm974, %v880
  %1010 = vst.msk [vmem:[%s3 + $0x8c] sm:$0xf] %vm974, %v881
  %1011 = vst.msk [vmem:[%s3 + $0x90] sm:$0xf] %vm974, %v882
  %1012 = vst.msk [vmem:[%s3 + $0x94] sm:$0xf] %vm974, %v883
  %1013 = vst.msk [vmem:[%s3 + $0x98] sm:$0xf] %vm974, %v884
  %1014 = vst.msk [vmem:[%s3 + $0x9c] sm:$0xf] %vm974, %v885
  %1015 = vst.msk [vmem:[%s3 + $0xa0] sm:$0xf] %vm974, %v886
  %1016 = vst.msk [vmem:[%s3 + $0xa4] sm:$0xf] %vm974, %v887
  %1017 = vst.msk [vmem:[%s3 + $0xa8] sm:$0xf] %vm974, %v888
  %1018 = vst.msk [vmem:[%s3 + $0xac] sm:$0xf] %vm974, %v889
  %1019 = vst.msk [vmem:[%s3 + $0xb0] sm:$0xf] %vm974, %v890
  %1020 = vst.msk [vmem:[%s3 + $0xb4] sm:$0xf] %vm974, %v891
  %1021 = vst.msk [vmem:[%s3 + $0xb8] sm:$0xf] %vm974, %v892
  %1022 = vst.msk [vmem:[%s3 + $0xbc] sm:$0xf] %vm974, %v893
  %1023 = vst.msk [vmem:[%s3 + $0xc0] sm:$0xf] %vm974, %v894
  %1024 = vst.msk [vmem:[%s3 + $0xc4] sm:$0xf] %vm974, %v895
  %1025 = vst.msk [vmem:[%s3 + $0xc8] sm:$0xf] %vm974, %v896
  %1026 = vst.msk [vmem:[%s3 + $0xcc] sm:$0xf] %vm974, %v897
  %1027 = vst.msk [vmem:[%s3 + $0xd0] sm:$0xf] %vm974, %v898
  %1028 = vst.msk [vmem:[%s3 + $0xd4] sm:$0xf] %vm974, %v899
  %1029 = vst.msk [vmem:[%s3 + $0xd8] sm:$0xf] %vm974, %v900
  %1030 = vst.msk [vmem:[%s3 + $0xdc] sm:$0xf] %vm974, %v901
  %1031 = vst.msk [vmem:[%s3 + $0xe0] sm:$0xf] %vm974, %v902
  %1032 = vst.msk [vmem:[%s3 + $0xe4] sm:$0xf] %vm974, %v903
  %1033 = vst.msk [vmem:[%s3 + $0xe8] sm:$0xf] %vm974, %v904
  %1034 = vst.msk [vmem:[%s3 + $0xec] sm:$0xf] %vm974, %v905
  %1035 = vst.msk [vmem:[%s3 + $0xf0] sm:$0xf] %vm974, %v906
  %1036 = vst.msk [vmem:[%s3 + $0xf4] sm:$0xf] %vm974, %v907
  %1037 = vst.msk [vmem:[%s3 + $0xf8] sm:$0xf] %vm974, %v908
  %1038 = vst.msk [vmem:[%s3 + $0xfc] sm:$0xf] %vm974, %v909
  // Predicated region
  $region14: #{patch_embed_forward.2} parent=0 // pred_check
    _
  $region15: #{patch_embed_forward.2} parent=0 // pred_check_branch
    %1040 = sbr.rel (0) target = $region17
  $region16: #{patch_embed_forward.2} parent=0 // pred_region
    _
  $region17: #{patch_embed_forward.2} parent=0 // pred_fallthru
    _
  // Predicated region
  $region18: #{patch_embed_forward.2} parent=0 // pred_check
    _
  $region19: #{patch_embed_forward.2} parent=0 // pred_check_branch
    %1042 = sbr.rel (0) target = $region21
  $region20: #{patch_embed_forward.2} parent=0 // pred_region
    _
  $region21: #{patch_embed_forward.2} parent=0 // pred_fallthru
    _

// kernel: patch_embed_forward.3
$region0: #{patch_embed_forward.3}
  #allocation0 [shape = 'u32[]', space=smem, size = 0x4, offset = 0x4, fixed_abs, tag = 'smem constant byte address 0x4 - core index']
  #allocation1 [shape = 'u32[144,128]{1,0:T(1,128)}', space=vmem, size = 0x12000, scoped, tag = 'internal scratch']
  #allocation2 [shape = 'f32[64,96]{1,0:T(8,128)}', space=vmem, size = 0x8000, scoped, tag = 'scratch operand']
  %s0 = inlined_call_operand.vmem [shape: bf16[2,6,72,64], index: 0, kind: input, shape index: {}]
  %s1 = inlined_call_operand.vmem [shape: bf16[9,64,96], index: 1, kind: input, shape index: {}]
  %s2 = inlined_call_operand.vmem [shape: f32[1,96], index: 2, kind: input, shape index: {}]
  %s3 = inlined_call_operand.hbm [shape: f32[2,64,96], index: 3, kind: output, shape index: {}]
  %s4 = sld [smem:[#allocation0]]
  $region45: #{patch_embed_forward.3} parent=0
    _
  %s6 = ssub.s32 1, %s4
  %s7 = scalar_select 0, %s6, %s4
  $region1: #{patch_embed_forward.3} parent=0
    #allocation3 [shape = 'u8[65536]{0}', space=vmem, size = 0x10000, scoped, tag = 'output window, operand 0']
    #allocation4 [shape = 's32[2]{0}', space=sflag, size = 0x8, scoped, tag = 'scoped memory for patch_embed_forward.3']
    %8 = vsyncpa [#allocation4], 0
    %s9 = scalar_lea.sflag [#allocation4], 1
    %10 = vsyncpa %s9, 0
    loop: start=0, step=1, limit=4
    $region2: #{patch_embed_forward.3} parent=1 // loop_pre_header
      _
    $region3: #{patch_embed_forward.3} parent=1 // loop_header
      %s12 = sphi 0, %s16
      %p13 = scmp.ge.s32.totalorder %s12, 4
      %s22 = sphi 0, %s24
      %s25 = sphi 0, %s22
      %s26 = sphi 0, %s25
      %s42 = sphi 0, %s26
      %s46 = sphi 0, %s46
      %s48 = sphi 0, %s46
      %s49 = sphi 0, %s48
      %s63 = sphi 0, %s49
      %s67 = sphi 0, %s67
      %s69 = sphi 0, %s67
      %s70 = sphi 0, %s69
      %s84 = sphi 0, %s70
      %s90 = sphi 0, %s92
      %s93 = sphi 0, %s90
      %s94 = sphi 0, %s93
      %s110 = sphi 0, %s94
    $region4: #{patch_embed_forward.3} parent=1 // loop_header_branch
      %15 = sbr.rel (%p13) target = $region8
    $region5: #{patch_embed_forward.3} parent=1 // loop_body
      %s17 = ssub.s32 %s12, 1
      %s18 = ssub.s32 %s12, 2
      %s19 = sadd.s32 %s12, 1
      %s20 = ssub.s32 %s12, %s19
      %p21 = scmp.eq.s32.totalorder %s20, 0
      %s23 = sadd.s32 %s22, 1
      %s24 = scalar_select %p21, %s22, %s23
      %p27 = pneg %p21
      %p28 = scmp.eq.s32.totalorder %s12, 1
      %p29 = por %p27, %p28
      %p30 = scmp.ne.s32.totalorder %s22, %s25
      %p31 = scmp.eq.s32.totalorder %s12, 0
      %p32 = por %p30, %p31
      %p33 = scmp.ne.s32.totalorder %s22, %s25
      %p34 = scmp.eq.s32.totalorder %s17, 1
      %p35 = por %p33, %p34
      %p36 = scmp.ne.s32.totalorder %s25, %s26
      %p37 = scmp.eq.s32.totalorder %s17, 0
      %p38 = por %p36, %p37
      %p39 = scmp.ne.s32.totalorder %s25, %s26
      %p40 = scmp.eq.s32.totalorder %s18, 1
      %p41 = por %p39, %p40
      %p43 = scmp.ne.s32.totalorder %s26, %s42
      %p44 = scmp.eq.s32.totalorder %s18, 0
      %p45 = por %p43, %p44
      %s47 = sadd.s32 %s46, 1
      %p50 = scmp.eq.s32.totalorder %s12, 1
      %p51 = scmp.ne.s32.totalorder %s46, %s48
      %p52 = scmp.eq.s32.totalorder %s12, 0
      %p53 = por %p51, %p52
      %p54 = scmp.ne.s32.totalorder %s46, %s48
      %p55 = scmp.eq.s32.totalorder %s17, 1
      %p56 = por %p54, %p55
      %p57 = scmp.ne.s32.totalorder %s48, %s49
      %p58 = scmp.eq.s32.totalorder %s17, 0
      %p59 = por %p57, %p58
      %p60 = scmp.ne.s32.totalorder %s48, %s49
      %p61 = scmp.eq.s32.totalorder %s18, 1
      %p62 = por %p60, %p61
      %p64 = scmp.ne.s32.totalorder %s49, %s63
      %p65 = scmp.eq.s32.totalorder %s18, 0
      %p66 = por %p64, %p65
      %s68 = sadd.s32 %s67, 1
      %p71 = scmp.eq.s32.totalorder %s12, 1
      %p72 = scmp.ne.s32.totalorder %s67, %s69
      %p73 = scmp.eq.s32.totalorder %s12, 0
      %p74 = por %p72, %p73
      %p75 = scmp.ne.s32.totalorder %s67, %s69
      %p76 = scmp.eq.s32.totalorder %s17, 1
      %p77 = por %p75, %p76
      %p78 = scmp.ne.s32.totalorder %s69, %s70
      %p79 = scmp.eq.s32.totalorder %s17, 0
      %p80 = por %p78, %p79
      %p81 = scmp.ne.s32.totalorder %s69, %s70
      %p82 = scmp.eq.s32.totalorder %s18, 1
      %p83 = por %p81, %p82
      %p85 = scmp.ne.s32.totalorder %s70, %s84
      %p86 = scmp.eq.s32.totalorder %s18, 0
      %p87 = por %p85, %p86
      %s88 = ssub.s32 %s12, %s19
      %p89 = scmp.eq.s32.totalorder %s88, 0
      %s91 = sadd.s32 %s90, 1
      %s92 = scalar_select %p89, %s90, %s91
      %p95 = pneg %p89
      %p96 = scmp.eq.s32.totalorder %s12, 1
      %p97 = por %p95, %p96
      %p98 = scmp.ne.s32.totalorder %s90, %s93
      %p99 = scmp.eq.s32.totalorder %s12, 0
      %p100 = por %p98, %p99
      %p101 = scmp.ne.s32.totalorder %s90, %s93
      %p102 = scmp.eq.s32.totalorder %s17, 1
      %p103 = por %p101, %p102
      %p104 = scmp.ne.s32.totalorder %s93, %s94
      %p105 = scmp.eq.s32.totalorder %s17, 0
      %p106 = por %p104, %p105
      %p107 = scmp.ne.s32.totalorder %s93, %s94
      %p108 = scmp.eq.s32.totalorder %s18, 1
      %p109 = por %p107, %p108
      %p111 = scmp.ne.s32.totalorder %s94, %s110
      %p112 = scmp.eq.s32.totalorder %s18, 0
      %p113 = por %p111, %p112
      %p114 = scmp.le.s32.totalorder 1, %s12
      %p115 = scmp.lt.s32.totalorder %s12, 3
      %p116 = pnand %p114, %p115
      %p117 = pneg %p116
      // Predicated region
      $region9: #{patch_embed_forward.3} parent=5 // pred_check
        _
      $region10: #{patch_embed_forward.3} parent=5 // pred_check_branch
        %119 = sbr.rel (%p116) target = $region12
      $region11: #{patch_embed_forward.3} parent=5 // pred_region
        %s120 = ssub.s32 %s12, 1
        // Predicated region
        $region13: #{patch_embed_forward.3} parent=11 // pred_check
          %p121 = pneg %p59
        $region14: #{patch_embed_forward.3} parent=11 // pred_check_branch
          %123 = sbr.rel (%p121) target = $region16
        $region15: #{patch_embed_forward.3} parent=11 // pred_region
          _
        $region16: #{patch_embed_forward.3} parent=11 // pred_fallthru
          _
        // Predicated region
        $region17: #{patch_embed_forward.3} parent=11 // pred_check
          %p124 = pneg %p80
        $region18: #{patch_embed_forward.3} parent=11 // pred_check_branch
          %126 = sbr.rel (%p124) target = $region20
        $region19: #{patch_embed_forward.3} parent=11 // pred_region
          _
        $region20: #{patch_embed_forward.3} parent=11 // pred_fallthru
          _
      $region12: #{patch_embed_forward.3} parent=5 // pred_fallthru
        _
      %p127 = scmp.lt.s32.totalorder %s12, 2
      // Predicated region
      $region21: #{patch_embed_forward.3} parent=5 // pred_check
        %p128 = pneg %p127
      $region22: #{patch_embed_forward.3} parent=5 // pred_check_branch
        %130 = sbr.rel (%p128) target = $region24
      $region23: #{patch_embed_forward.3} parent=5 // pred_region
        // Predicated region
        $region25: #{patch_embed_forward.3} parent=23 // pred_check
          %p131 = pneg %p32
        $region26: #{patch_embed_forward.3} parent=23 // pred_check_branch
          %133 = sbr.rel (%p131) target = $region28
        $region27: #{patch_embed_forward.3} parent=23 // pred_region
          %p134 = scmp.lt.s32.totalorder %s12, 1
          %s135 = scalar_select %p134, %s12, 1
          %s136 = smul.addr %s135, 54
          %s137 = smul.addr %s136, 4
          %s138 = scalar_lea.vmem %s0, %s137
        $region28: #{patch_embed_forward.3} parent=23 // pred_fallthru
          _
      $region24: #{patch_embed_forward.3} parent=5 // pred_fallthru
        _
      %p139 = scmp.le.s32.totalorder 1, %s12
      %p140 = scmp.lt.s32.totalorder %s12, 3
      %p141 = pnand %p139, %p140
      %p142 = pneg %p141
      // Predicated region
      $region29: #{patch_embed_forward.3} parent=5 // pred_check
        _
      $region30: #{patch_embed_forward.3} parent=5 // pred_check_branch
        %144 = sbr.rel (%p141) target = $region32
      $region31: #{patch_embed_forward.3} parent=5 // pred_region
        %s145 = ssub.s32 %s12, 1
        %p146 = scmp.lt.s32.totalorder %s17, 1
        %s147 = scalar_select %p146, %s17, 1
        %s148 = smul.addr %s147, 54
        %s149 = smul.addr %s148, 4
        %s150 = scalar_lea.vmem %s0, %s149
        %p151 = pneg %p38
        %p152 = pneg %p35
        %p153 = pneg %p59
        %p154 = pneg %p56
        %p155 = pneg %p80
        %p156 = pneg %p77
        %p157 = pneg %p106
        %p158 = pneg %p103
        %s159 = sand.u32 %s93, 1
        %s160 = scalar_lea.sflag [#allocation4], %s159
        %s161 = sand.u32 %s93, 1
        %s162 = smul.addr %s161, 64
        %s163 = scalar_lea.vmem [#allocation3], %s162
        %p164 = scmp.lt.s32.totalorder %s17, 1
        %s165 = scalar_select %p164, %s17, 1
        %s166 = smul.addr %s165, 54
        %s167 = smul.addr %s166, 4
        %s168 = scalar_lea.vmem %s0, %s167
        %v170 = vld [vmem:[%s168] sm:$0xf]
        %v171 = vld [vmem:[%s168 + $0x4] sm:$0xf]
        %v172 = vld [vmem:[%s168 + $0x8] sm:$0xf]
        %v173 = vld [vmem:[%s168 + $0xc] sm:$0xf]
        %v174 = vld [vmem:[%s168 + $0x10] sm:$0xf]
        %v175 = vld [vmem:[%s168 + $0x14] sm:$0xf]
        %v176 = vld [vmem:[%s168 + $0x18] sm:$0xf]
        %v177 = vld [vmem:[%s168 + $0x1c] sm:$0xf]
        %v178 = vld [vmem:[%s1] sm:$0xf]
        %v179 = vld [vmem:[%s1 + $0x4] sm:$0xf]
        %v180 = vld [vmem:[%s1 + $0x8] sm:$0xf]
        %v181 = vld [vmem:[%s1 + $0xc] sm:$0xf]
        %v182 = vld [vmem:[%s1 + $0x10] sm:$0xf]
        %v183 = vld [vmem:[%s1 + $0x14] sm:$0xf]
        %v184 = vld [vmem:[%s1 + $0x18] sm:$0xf]
        %v185 = vld [vmem:[%s1 + $0x1c] sm:$0xf]
        %v194 = vunpack.c.l.b16 %v170
        %v195 = vunpack.c.l.b16 %v171
        %v196 = vunpack.c.l.b16 %v172
        %v197 = vunpack.c.l.b16 %v173
        %v198 = vunpack.c.l.b16 %v174
        %v199 = vunpack.c.l.b16 %v175
        %v200 = vunpack.c.l.b16 %v176
        %v201 = vunpack.c.l.b16 %v177
        %v202 = vpack.c.b16 %v195, %v194
        %v203 = vpack.c.b16 %v197, %v196
        %v204 = vpack.c.b16 %v199, %v198
        %v205 = vpack.c.b16 %v201, %v200
        %v214 = vunpack.c.l.b16 %v178
        %v215 = vunpack.c.l.b16 %v179
        %v216 = vunpack.c.l.b16 %v180
        %v217 = vunpack.c.l.b16 %v181
        %v218 = vunpack.c.l.b16 %v182
        %v219 = vunpack.c.l.b16 %v183
        %v220 = vunpack.c.l.b16 %v184
        %v221 = vunpack.c.l.b16 %v185
        %v222 = vpack.c.b16 %v215, %v214
        %v223 = vpack.c.b16 %v217, %v216
        %v224 = vpack.c.b16 %v219, %v218
        %v225 = vpack.c.b16 %v221, %v220
        %vm230 = vcmask 523264
        %v232 = vsel %vm230, %v202, 0
        %v235 = vsel %vm230, %v203, 0
        %v238 = vsel %vm230, %v204, 0
        %v241 = vsel %vm230, %v205, 0
        %243 = vmatprep.subr.bf16.mxu0 0
        %244 = vmatpush1.bf16.msra.mxu0 0
        %245 = vmatprep.subr.bf16.mxu0 0
        %246 = vmatpush1.bf16.msra.mxu0 0
        %247 = vmatprep.subr.bf16.mxu0 0
        %248 = vmatpush1.bf16.msra.mxu0 0
        %249 = vmatprep.subr.bf16.mxu0 0
        %250 = vmatpush1.bf16.msra.mxu0 0
        %251 = vmatprep.subr.bf16.mxu0 0
        %252 = vmatpush1.bf16.msra.mxu0 %v225
        %253 = vmatprep.subr.bf16.mxu0 0
        %254 = vmatpush1.bf16.msra.mxu0 %v224
        %255 = vmatprep.subr.bf16.mxu0 0
        %256 = vmatpush1.bf16.msra.mxu0 %v223
        %257 = vmatprep.subr.bf16.mxu0 0
        %258 = vmatpush1.bf16.msra.mxu0 %v222
        %259 = vmatprep.subr.bf16.mxu0 0
        %260 = vmatpush2.bf16.msra.mxu0 0
        %261 = vmatprep.subr.bf16.mxu0 0
        %262 = vmatpush2.bf16.msra.mxu0 0
        %263 = vmatprep.subr.bf16.mxu0 0
        %264 = vmatpush2.bf16.msra.mxu0 0
        %265 = vmatprep.subr.bf16.mxu0 0
        %266 = vmatpush2.bf16.msra.mxu0 0
        %267 = vmatprep.subr.bf16.mxu0 0
        %268 = vmatpush2.bf16.msra.mxu0 0
        %269 = vmatprep.subr.bf16.mxu0 0
        %270 = vmatpush2.bf16.msra.mxu0 0
        %271 = vmatprep.subr.bf16.mxu0 0
        %272 = vmatpush2.bf16.msra.mxu0 0
        %273 = vmatprep.subr.bf16.mxu0 0
        %274 = vmatpush2.bf16.msra.mxu0 0
        %275 = vmatprep.mubr.bf16.mxu0 0
        %276 = vmatmul.mubr.bf16.gmra.mxu0 %v232
        %v277 = vpop.f32.mrf.mxu0
        %v278 = vadd.f32 0.0, %v277
        %v279 = vpop.f32.mrf.mxu0
        %v280 = vpop.f32.mrf.mxu0
        %v281 = vadd.f32 0.0, %v280
        %v282 = vpop.f32.mrf.mxu0
        %283 = vmatprep.mubr.bf16.mxu0 0
        %284 = vmatmul.mubr.bf16.gmra.mxu0 %v235
        %v285 = vpop.f32.mrf.mxu0
        %v286 = vadd.f32 0.0, %v285
        %v287 = vpop.f32.mrf.mxu0
        %v288 = vpop.f32.mrf.mxu0
        %v289 = vadd.f32 0.0, %v288
        %v290 = vpop.f32.mrf.mxu0
        %291 = vmatprep.mubr.bf16.mxu0 0
        %292 = vmatmul.mubr.bf16.gmra.mxu0 %v238
        %v293 = vpop.f32.mrf.mxu0
        %v294 = vadd.f32 0.0, %v293
        %v295 = vpop.f32.mrf.mxu0
        %v296 = vpop.f32.mrf.mxu0
        %v297 = vadd.f32 0.0, %v296
        %v298 = vpop.f32.mrf.mxu0
        %299 = vmatprep.mubr.bf16.mxu0 0
        %300 = vmatmul.mubr.bf16.gmra.mxu0 %v241
        %v301 = vpop.f32.mrf.mxu0
        %v302 = vadd.f32 0.0, %v301
        %v303 = vpop.f32.mrf.mxu0
        %v304 = vpop.f32.mrf.mxu0
        %v305 = vadd.f32 0.0, %v304
        %v306 = vpop.f32.mrf.mxu0
        %307 = vdwg.mxu0
        %vm308 = vcmask 785408
        %309 = vst.msk [vmem:[#allocation2] sm:$0xff] %vm308, %v278
        %310 = vst.msk [vmem:[#allocation2 + $0x8] sm:$0xff] %vm308, %v281
        %311 = vst.msk [vmem:[#allocation2 + $0x10] sm:$0xff] %vm308, %v286
        %312 = vst.msk [vmem:[#allocation2 + $0x18] sm:$0xff] %vm308, %v289
        %313 = vst.msk [vmem:[#allocation2 + $0x20] sm:$0xff] %vm308, %v294
        %314 = vst.msk [vmem:[#allocation2 + $0x28] sm:$0xff] %vm308, %v297
        %315 = vst.msk [vmem:[#allocation2 + $0x30] sm:$0xff] %vm308, %v302
        %316 = vst.msk [vmem:[#allocation2 + $0x38] sm:$0xff] %vm308, %v305
        %s317 = scalar_lea.vmem %s168, 36
        %v318 = vld [vmem:[%s317] sm:$0xf]
        %v319 = vld [vmem:[%s317 + $0x4] sm:$0xf]
        %v320 = vld [vmem:[%s317 + $0x8] sm:$0xf]
        %v321 = vld [vmem:[%s317 + $0xc] sm:$0xf]
        %v322 = vld [vmem:[%s317 + $0x10] sm:$0xf]
        %v323 = vld [vmem:[%s317 + $0x14] sm:$0xf]
        %v324 = vld [vmem:[%s317 + $0x18] sm:$0xf]
        %v325 = vld [vmem:[%s317 + $0x1c] sm:$0xf]
        %s326 = scalar_lea.vmem %s1, 32
        %v327 = vld [vmem:[%s326] sm:$0xf]
        %v328 = vld [vmem:[%s326 + $0x4] sm:$0xf]
        %v329 = vld [vmem:[%s326 + $0x8] sm:$0xf]
        %v330 = vld [vmem:[%s326 + $0xc] sm:$0xf]
        %v331 = vld [vmem:[%s326 + $0x10] sm:$0xf]
        %v332 = vld [vmem:[%s326 + $0x14] sm:$0xf]
        %v333 = vld [vmem:[%s326 + $0x18] sm:$0xf]
        %v334 = vld [vmem:[%s326 + $0x1c] sm:$0xf]
        %v343 = vunpack.c.l.b16 %v318
        %v344 = vunpack.c.l.b16 %v319
        %v345 = vunpack.c.l.b16 %v320
        %v346 = vunpack.c.l.b16 %v321
        %v347 = vunpack.c.l.b16 %v322
        %v348 = vunpack.c.l.b16 %v323
        %v349 = vunpack.c.l.b16 %v324
        %v350 = vunpack.c.l.b16 %v325
        %v351 = vpack.c.b16 %v344, %v343
        %v352 = vpack.c.b16 %v346, %v345
        %v353 = vpack.c.b16 %v348, %v347
        %v354 = vpack.c.b16 %v350, %v349
        %v363 = vunpack.c.l.b16 %v327
        %v364 = vunpack.c.l.b16 %v328
        %v365 = vunpack.c.l.b16 %v329
        %v366 = vunpack.c.l.b16 %v330
        %v367 = vunpack.c.l.b16 %v331
        %v368 = vunpack.c.l.b16 %v332
        %v369 = vunpack.c.l.b16 %v333
        %v370 = vunpack.c.l.b16 %v334
        %v371 = vpack.c.b16 %v364, %v363
        %v372 = vpack.c.b16 %v366, %v365
        %v373 = vpack.c.b16 %v368, %v367
        %v374 = vpack.c.b16 %v370, %v369
        %v380 = vsel %vm230, %v351, 0
        %v383 = vsel %vm230, %v352, 0
        %v386 = vsel %vm230, %v353, 0
        %v389 = vsel %vm230, %v354, 0
        %391 = vmatprep.subr.bf16.mxu0 0
        %392 = vmatpush1.bf16.msra.mxu0 0
        %393 = vmatprep.subr.bf16.mxu0 0
        %394 = vmatpush1.bf16.msra.mxu0 0
        %395 = vmatprep.subr.bf16.mxu0 0
        %396 = vmatpush1.bf16.msra.mxu0 0
        %397 = vmatprep.subr.bf16.mxu0 0
        %398 = vmatpush1.bf16.msra.mxu0 0
        %399 = vmatprep.subr.bf16.mxu0 0
        %400 = vmatpush1.bf16.msra.mxu0 %v374
        %401 = vmatprep.subr.bf16.mxu0 0
        %402 = vmatpush1.bf16.msra.mxu0 %v373
        %403 = vmatprep.subr.bf16.mxu0 0
        %404 = vmatpush1.bf16.msra.mxu0 %v372
        %405 = vmatprep.subr.bf16.mxu0 0
        %406 = vmatpush1.bf16.msra.mxu0 %v371
        %407 = vmatprep.subr.bf16.mxu0 0
        %408 = vmatpush2.bf16.msra.mxu0 0
        %409 = vmatprep.subr.bf16.mxu0 0
        %410 = vmatpush2.bf16.msra.mxu0 0
        %411 = vmatprep.subr.bf16.mxu0 0
        %412 = vmatpush2.bf16.msra.mxu0 0
        %413 = vmatprep.subr.bf16.mxu0 0
        %414 = vmatpush2.bf16.msra.mxu0 0
        %415 = vmatprep.subr.bf16.mxu0 0
        %416 = vmatpush2.bf16.msra.mxu0 0
        %417 = vmatprep.subr.bf16.mxu0 0
        %418 = vmatpush2.bf16.msra.mxu0 0
        %419 = vmatprep.subr.bf16.mxu0 0
        %420 = vmatpush2.bf16.msra.mxu0 0
        %421 = vmatprep.subr.bf16.mxu0 0
        %422 = vmatpush2.bf16.msra.mxu0 0
        %423 = vmatprep.mubr.bf16.mxu0 0
        %424 = vmatmul.mubr.bf16.gmra.mxu0 %v380
        %v425 = vpop.f32.mrf.mxu0
        %v426 = vadd.f32 0.0, %v425
        %v427 = vpop.f32.mrf.mxu0
        %v428 = vpop.f32.mrf.mxu0
        %v429 = vadd.f32 0.0, %v428
        %v430 = vpop.f32.mrf.mxu0
        %431 = vmatprep.mubr.bf16.mxu0 0
        %432 = vmatmul.mubr.bf16.gmra.mxu0 %v383
        %v433 = vpop.f32.mrf.mxu0
        %v434 = vadd.f32 0.0, %v433
        %v435 = vpop.f32.mrf.mxu0
        %v436 = vpop.f32.mrf.mxu0
        %v437 = vadd.f32 0.0, %v436
        %v438 = vpop.f32.mrf.mxu0
        %439 = vmatprep.mubr.bf16.mxu0 0
        %440 = vmatmul.mubr.bf16.gmra.mxu0 %v386
        %v441 = vpop.f32.mrf.mxu0
        %v442 = vadd.f32 0.0, %v441
        %v443 = vpop.f32.mrf.mxu0
        %v444 = vpop.f32.mrf.mxu0
        %v445 = vadd.f32 0.0, %v444
        %v446 = vpop.f32.mrf.mxu0
        %447 = vmatprep.mubr.bf16.mxu0 0
        %448 = vmatmul.mubr.bf16.gmra.mxu0 %v389
        %v449 = vpop.f32.mrf.mxu0
        %v450 = vadd.f32 0.0, %v449
        %v451 = vpop.f32.mrf.mxu0
        %v452 = vpop.f32.mrf.mxu0
        %v453 = vadd.f32 0.0, %v452
        %v454 = vpop.f32.mrf.mxu0
        %455 = vdwg.mxu0
        %v456 = vld [vmem:[#allocation2] sm:$0xff]
        %v457 = vld [vmem:[#allocation2 + $0x8] sm:$0xff]
        %v458 = vld [vmem:[#allocation2 + $0x10] sm:$0xff]
        %v459 = vld [vmem:[#allocation2 + $0x18] sm:$0xff]
        %v460 = vld [vmem:[#allocation2 + $0x20] sm:$0xff]
        %v461 = vld [vmem:[#allocation2 + $0x28] sm:$0xff]
        %v462 = vld [vmem:[#allocation2 + $0x30] sm:$0xff]
        %v463 = vld [vmem:[#allocation2 + $0x38] sm:$0xff]
        %v464 = vadd.f32 %v456, %v426
        %v465 = vadd.f32 %v457, %v429
        %v466 = vadd.f32 %v458, %v434
        %v467 = vadd.f32 %v459, %v437
        %v468 = vadd.f32 %v460, %v442
        %v469 = vadd.f32 %v461, %v445
        %v470 = vadd.f32 %v462, %v450
        %v471 = vadd.f32 %v463, %v453
        %472 = vst.msk [vmem:[#allocation2] sm:$0xff] %vm308, %v464
        %473 = vst.msk [vmem:[#allocation2 + $0x8] sm:$0xff] %vm308, %v465
        %474 = vst.msk [vmem:[#allocation2 + $0x10] sm:$0xff] %vm308, %v466
        %475 = vst.msk [vmem:[#allocation2 + $0x18] sm:$0xff] %vm308, %v467
        %476 = vst.msk [vmem:[#allocation2 + $0x20] sm:$0xff] %vm308, %v468
        %477 = vst.msk [vmem:[#allocation2 + $0x28] sm:$0xff] %vm308, %v469
        %478 = vst.msk [vmem:[#allocation2 + $0x30] sm:$0xff] %vm308, %v470
        %479 = vst.msk [vmem:[#allocation2 + $0x38] sm:$0xff] %vm308, %v471
        %s480 = scalar_lea.vmem %s168, 72
        %v481 = vld [vmem:[%s480] sm:$0xf]
        %v482 = vld [vmem:[%s480 + $0x4] sm:$0xf]
        %v483 = vld [vmem:[%s480 + $0x8] sm:$0xf]
        %v484 = vld [vmem:[%s480 + $0xc] sm:$0xf]
        %v485 = vld [vmem:[%s480 + $0x10] sm:$0xf]
        %v486 = vld [vmem:[%s480 + $0x14] sm:$0xf]
        %v487 = vld [vmem:[%s480 + $0x18] sm:$0xf]
        %v488 = vld [vmem:[%s480 + $0x1c] sm:$0xf]
        %s489 = scalar_lea.vmem %s1, 64
        %v490 = vld [vmem:[%s489] sm:$0xf]
        %v491 = vld [vmem:[%s489 + $0x4] sm:$0xf]
        %v492 = vld [vmem:[%s489 + $0x8] sm:$0xf]
        %v493 = vld [vmem:[%s489 + $0xc] sm:$0xf]
        %v494 = vld [vmem:[%s489 + $0x10] sm:$0xf]
        %v495 = vld [vmem:[%s489 + $0x14] sm:$0xf]
        %v496 = vld [vmem:[%s489 + $0x18] sm:$0xf]
        %v497 = vld [vmem:[%s489 + $0x1c] sm:$0xf]
        %v506 = vunpack.c.l.b16 %v481
        %v507 = vunpack.c.l.b16 %v482
        %v508 = vunpack.c.l.b16 %v483
        %v509 = vunpack.c.l.b16 %v484
        %v510 = vunpack.c.l.b16 %v485
        %v511 = vunpack.c.l.b16 %v486
        %v512 = vunpack.c.l.b16 %v487
        %v513 = vunpack.c.l.b16 %v488
        %v514 = vpack.c.b16 %v507, %v506
        %v515 = vpack.c.b16 %v509, %v508
        %v516 = vpack.c.b16 %v511, %v510
        %v517 = vpack.c.b16 %v513, %v512
        %v526 = vunpack.c.l.b16 %v490
        %v527 = vunpack.c.l.b16 %v491
        %v528 = vunpack.c.l.b16 %v492
        %v529 = vunpack.c.l.b16 %v493
        %v530 = vunpack.c.l.b16 %v494
        %v531 = vunpack.c.l.b16 %v495
        %v532 = vunpack.c.l.b16 %v496
        %v533 = vunpack.c.l.b16 %v497
        %v534 = vpack.c.b16 %v527, %v526
        %v535 = vpack.c.b16 %v529, %v528
        %v536 = vpack.c.b16 %v531, %v530
        %v537 = vpack.c.b16 %v533, %v532
        %v543 = vsel %vm230, %v514, 0
        %v546 = vsel %vm230, %v515, 0
        %v549 = vsel %vm230, %v516, 0
        %v552 = vsel %vm230, %v517, 0
        %554 = vmatprep.subr.bf16.mxu0 0
        %555 = vmatpush1.bf16.msra.mxu0 0
        %556 = vmatprep.subr.bf16.mxu0 0
        %557 = vmatpush1.bf16.msra.mxu0 0
        %558 = vmatprep.subr.bf16.mxu0 0
        %559 = vmatpush1.bf16.msra.mxu0 0
        %560 = vmatprep.subr.bf16.mxu0 0
        %561 = vmatpush1.bf16.msra.mxu0 0
        %562 = vmatprep.subr.bf16.mxu0 0
        %563 = vmatpush1.bf16.msra.mxu0 %v537
        %564 = vmatprep.subr.bf16.mxu0 0
        %565 = vmatpush1.bf16.msra.mxu0 %v536
        %566 = vmatprep.subr.bf16.mxu0 0
        %567 = vmatpush1.bf16.msra.mxu0 %v535
        %568 = vmatprep.subr.bf16.mxu0 0
        %569 = vmatpush1.bf16.msra.mxu0 %v534
        %570 = vmatprep.subr.bf16.mxu0 0
        %571 = vmatpush2.bf16.msra.mxu0 0
        %572 = vmatprep.subr.bf16.mxu0 0
        %573 = vmatpush2.bf16.msra.mxu0 0
        %574 = vmatprep.subr.bf16.mxu0 0
        %575 = vmatpush2.bf16.msra.mxu0 0
        %576 = vmatprep.subr.bf16.mxu0 0
        %577 = vmatpush2.bf16.msra.mxu0 0
        %578 = vmatprep.subr.bf16.mxu0 0
        %579 = vmatpush2.bf16.msra.mxu0 0
        %580 = vmatprep.subr.bf16.mxu0 0
        %581 = vmatpush2.bf16.msra.mxu0 0
        %582 = vmatprep.subr.bf16.mxu0 0
        %583 = vmatpush2.bf16.msra.mxu0 0
        %584 = vmatprep.subr.bf16.mxu0 0
        %585 = vmatpush2.bf16.msra.mxu0 0
        %586 = vmatprep.mubr.bf16.mxu0 0
        %587 = vmatmul.mubr.bf16.gmra.mxu0 %v543
        %v588 = vpop.f32.mrf.mxu0
        %v589 = vadd.f32 0.0, %v588
        %v590 = vpop.f32.mrf.mxu0
        %v591 = vpop.f32.mrf.mxu0
        %v592 = vadd.f32 0.0, %v591
        %v593 = vpop.f32.mrf.mxu0
        %594 = vmatprep.mubr.bf16.mxu0 0
        %595 = vmatmul.mubr.bf16.gmra.mxu0 %v546
        %v596 = vpop.f32.mrf.mxu0
        %v597 = vadd.f32 0.0, %v596
        %v598 = vpop.f32.mrf.mxu0
        %v599 = vpop.f32.mrf.mxu0
        %v600 = vadd.f32 0.0, %v599
        %v601 = vpop.f32.mrf.mxu0
        %602 = vmatprep.mubr.bf16.mxu0 0
        %603 = vmatmul.mubr.bf16.gmra.mxu0 %v549
        %v604 = vpop.f32.mrf.mxu0
        %v605 = vadd.f32 0.0, %v604
        %v606 = vpop.f32.mrf.mxu0
        %v607 = vpop.f32.mrf.mxu0
        %v608 = vadd.f32 0.0, %v607
        %v609 = vpop.f32.mrf.mxu0
        %610 = vmatprep.mubr.bf16.mxu0 0
        %611 = vmatmul.mubr.bf16.gmra.mxu0 %v552
        %v612 = vpop.f32.mrf.mxu0
        %v613 = vadd.f32 0.0, %v612
        %v614 = vpop.f32.mrf.mxu0
        %v615 = vpop.f32.mrf.mxu0
        %v616 = vadd.f32 0.0, %v615
        %v617 = vpop.f32.mrf.mxu0
        %618 = vdwg.mxu0
        %v619 = vld [vmem:[#allocation2] sm:$0xff]
        %v620 = vld [vmem:[#allocation2 + $0x8] sm:$0xff]
        %v621 = vld [vmem:[#allocation2 + $0x10] sm:$0xff]
        %v622 = vld [vmem:[#allocation2 + $0x18] sm:$0xff]
        %v623 = vld [vmem:[#allocation2 + $0x20] sm:$0xff]
        %v624 = vld [vmem:[#allocation2 + $0x28] sm:$0xff]
        %v625 = vld [vmem:[#allocation2 + $0x30] sm:$0xff]
        %v626 = vld [vmem:[#allocation2 + $0x38] sm:$0xff]
        %v627 = vadd.f32 %v619, %v589
        %v628 = vadd.f32 %v620, %v592
        %v629 = vadd.f32 %v621, %v597
        %v630 = vadd.f32 %v622, %v600
        %v631 = vadd.f32 %v623, %v605
        %v632 = vadd.f32 %v624, %v608
        %v633 = vadd.f32 %v625, %v613
        %v634 = vadd.f32 %v626, %v616
        %635 = vst.msk [vmem:[#allocation2] sm:$0xff] %vm308, %v627
        %636 = vst.msk [vmem:[#allocation2 + $0x8] sm:$0xff] %vm308, %v628
        %637 = vst.msk [vmem:[#allocation2 + $0x10] sm:$0xff] %vm308, %v629
        %638 = vst.msk [vmem:[#allocation2 + $0x18] sm:$0xff] %vm308, %v630
        %639 = vst.msk [vmem:[#allocation2 + $0x20] sm:$0xff] %vm308, %v631
        %640 = vst.msk [vmem:[#allocation2 + $0x28] sm:$0xff] %vm308, %v632
        %641 = vst.msk [vmem:[#allocation2 + $0x30] sm:$0xff] %vm308, %v633
        %642 = vst.msk [vmem:[#allocation2 + $0x38] sm:$0xff] %vm308, %v634
        %s643 = scalar_lea.vmem %s168, 108
        %v644 = vld [vmem:[%s643] sm:$0xf]
        %v645 = vld [vmem:[%s643 + $0x4] sm:$0xf]
        %v646 = vld [vmem:[%s643 + $0x8] sm:$0xf]
        %v647 = vld [vmem:[%s643 + $0xc] sm:$0xf]
        %v648 = vld [vmem:[%s643 + $0x10] sm:$0xf]
        %v649 = vld [vmem:[%s643 + $0x14] sm:$0xf]
        %v650 = vld [vmem:[%s643 + $0x18] sm:$0xf]
        %v651 = vld [vmem:[%s643 + $0x1c] sm:$0xf]
        %s652 = scalar_lea.vmem %s1, 96
        %v653 = vld [vmem:[%s652] sm:$0xf]
        %v654 = vld [vmem:[%s652 + $0x4] sm:$0xf]
        %v655 = vld [vmem:[%s652 + $0x8] sm:$0xf]
        %v656 = vld [vmem:[%s652 + $0xc] sm:$0xf]
        %v657 = vld [vmem:[%s652 + $0x10] sm:$0xf]
        %v658 = vld [vmem:[%s652 + $0x14] sm:$0xf]
        %v659 = vld [vmem:[%s652 + $0x18] sm:$0xf]
        %v660 = vld [vmem:[%s652 + $0x1c] sm:$0xf]
        %v669 = vunpack.c.l.b16 %v644
        %v670 = vunpack.c.l.b16 %v645
        %v671 = vunpack.c.l.b16 %v646
        %v672 = vunpack.c.l.b16 %v647
        %v673 = vunpack.c.l.b16 %v648
        %v674 = vunpack.c.l.b16 %v649
        %v675 = vunpack.c.l.b16 %v650
        %v676 = vunpack.c.l.b16 %v651
        %v677 = vpack.c.b16 %v670, %v669
        %v678 = vpack.c.b16 %v672, %v671
        %v679 = vpack.c.b16 %v674, %v673
        %v680 = vpack.c.b16 %v676, %v675
        %v689 = vunpack.c.l.b16 %v653
        %v690 = vunpack.c.l.b16 %v654
        %v691 = vunpack.c.l.b16 %v655
        %v692 = vunpack.c.l.b16 %v656
        %v693 = vunpack.c.l.b16 %v657
        %v694 = vunpack.c.l.b16 %v658
        %v695 = vunpack.c.l.b16 %v659
        %v696 = vunpack.c.l.b16 %v660
        %v697 = vpack.c.b16 %v690, %v689
        %v698 = vpack.c.b16 %v692, %v691
        %v699 = vpack.c.b16 %v694, %v693
        %v700 = vpack.c.b16 %v696, %v695
        %v706 = vsel %vm230, %v677, 0
        %v709 = vsel %vm230, %v678, 0
        %v712 = vsel %vm230, %v679, 0
        %v715 = vsel %vm230, %v680, 0
        %717 = vmatprep.subr.bf16.mxu0 0
        %718 = vmatpush1.bf16.msra.mxu0 0
        %719 = vmatprep.subr.bf16.mxu0 0
        %720 = vmatpush1.bf16.msra.mxu0 0
        %721 = vmatprep.subr.bf16.mxu0 0
        %722 = vmatpush1.bf16.msra.mxu0 0
        %723 = vmatprep.subr.bf16.mxu0 0
        %724 = vmatpush1.bf16.msra.mxu0 0
        %725 = vmatprep.subr.bf16.mxu0 0
        %726 = vmatpush1.bf16.msra.mxu0 %v700
        %727 = vmatprep.subr.bf16.mxu0 0
        %728 = vmatpush1.bf16.msra.mxu0 %v699
        %729 = vmatprep.subr.bf16.mxu0 0
        %730 = vmatpush1.bf16.msra.mxu0 %v698
        %731 = vmatprep.subr.bf16.mxu0 0
        %732 = vmatpush1.bf16.msra.mxu0 %v697
        %733 = vmatprep.subr.bf16.mxu0 0
        %734 = vmatpush2.bf16.msra.mxu0 0
        %735 = vmatprep.subr.bf16.mxu0 0
        %736 = vmatpush2.bf16.msra.mxu0 0
        %737 = vmatprep.subr.bf16.mxu0 0
        %738 = vmatpush2.bf16.msra.mxu0 0
        %739 = vmatprep.subr.bf16.mxu0 0
        %740 = vmatpush2.bf16.msra.mxu0 0
        %741 = vmatprep.subr.bf16.mxu0 0
        %742 = vmatpush2.bf16.msra.mxu0 0
        %743 = vmatprep.subr.bf16.mxu0 0
        %744 = vmatpush2.bf16.msra.mxu0 0
        %745 = vmatprep.subr.bf16.mxu0 0
        %746 = vmatpush2.bf16.msra.mxu0 0
        %747 = vmatprep.subr.bf16.mxu0 0
        %748 = vmatpush2.bf16.msra.mxu0 0
        %749 = vmatprep.mubr.bf16.mxu0 0
        %750 = vmatmul.mubr.bf16.gmra.mxu0 %v706
        %v751 = vpop.f32.mrf.mxu0
        %v752 = vadd.f32 0.0, %v751
        %v753 = vpop.f32.mrf.mxu0
        %v754 = vpop.f32.mrf.mxu0
        %v755 = vadd.f32 0.0, %v754
        %v756 = vpop.f32.mrf.mxu0
        %757 = vmatprep.mubr.bf16.mxu0 0
        %758 = vmatmul.mubr.bf16.gmra.mxu0 %v709
        %v759 = vpop.f32.mrf.mxu0
        %v760 = vadd.f32 0.0, %v759
        %v761 = vpop.f32.mrf.mxu0
        %v762 = vpop.f32.mrf.mxu0
        %v763 = vadd.f32 0.0, %v762
        %v764 = vpop.f32.mrf.mxu0
        %765 = vmatprep.mubr.bf16.mxu0 0
        %766 = vmatmul.mubr.bf16.gmra.mxu0 %v712
        %v767 = vpop.f32.mrf.mxu0
        %v768 = vadd.f32 0.0, %v767
        %v769 = vpop.f32.mrf.mxu0
        %v770 = vpop.f32.mrf.mxu0
        %v771 = vadd.f32 0.0, %v770
        %v772 = vpop.f32.mrf.mxu0
        %773 = vmatprep.mubr.bf16.mxu0 0
        %774 = vmatmul.mubr.bf16.gmra.mxu0 %v715
        %v775 = vpop.f32.mrf.mxu0
        %v776 = vadd.f32 0.0, %v775
        %v777 = vpop.f32.mrf.mxu0
        %v778 = vpop.f32.mrf.mxu0
        %v779 = vadd.f32 0.0, %v778
        %v780 = vpop.f32.mrf.mxu0
        %781 = vdwg.mxu0
        %v782 = vld [vmem:[#allocation2] sm:$0xff]
        %v783 = vld [vmem:[#allocation2 + $0x8] sm:$0xff]
        %v784 = vld [vmem:[#allocation2 + $0x10] sm:$0xff]
        %v785 = vld [vmem:[#allocation2 + $0x18] sm:$0xff]
        %v786 = vld [vmem:[#allocation2 + $0x20] sm:$0xff]
        %v787 = vld [vmem:[#allocation2 + $0x28] sm:$0xff]
        %v788 = vld [vmem:[#allocation2 + $0x30] sm:$0xff]
        %v789 = vld [vmem:[#allocation2 + $0x38] sm:$0xff]
        %v790 = vadd.f32 %v782, %v752
        %v791 = vadd.f32 %v783, %v755
        %v792 = vadd.f32 %v784, %v760
        %v793 = vadd.f32 %v785, %v763
        %v794 = vadd.f32 %v786, %v768
        %v795 = vadd.f32 %v787, %v771
        %v796 = vadd.f32 %v788, %v776
        %v797 = vadd.f32 %v789, %v779
        %798 = vst.msk [vmem:[#allocation2] sm:$0xff] %vm308, %v790
        %799 = vst.msk [vmem:[#allocation2 + $0x8] sm:$0xff] %vm308, %v791
        %800 = vst.msk [vmem:[#allocation2 + $0x10] sm:$0xff] %vm308, %v792
        %801 = vst.msk [vmem:[#allocation2 + $0x18] sm:$0xff] %vm308, %v793
        %802 = vst.msk [vmem:[#allocation2 + $0x20] sm:$0xff] %vm308, %v794
        %803 = vst.msk [vmem:[#allocation2 + $0x28] sm:$0xff] %vm308, %v795
        %804 = vst.msk [vmem:[#allocation2 + $0x30] sm:$0xff] %vm308, %v796
        %805 = vst.msk [vmem:[#allocation2 + $0x38] sm:$0xff] %vm308, %v797
        %s806 = scalar_lea.vmem %s168, 144
        %v807 = vld [vmem:[%s806] sm:$0xf]
        %v808 = vld [vmem:[%s806 + $0x4] sm:$0xf]
        %v809 = vld [vmem:[%s806 + $0x8] sm:$0xf]
        %v810 = vld [vmem:[%s806 + $0xc] sm:$0xf]
        %v811 = vld [vmem:[%s806 + $0x10] sm:$0xf]
        %v812 = vld [vmem:[%s806 + $0x14] sm:$0xf]
        %v813 = vld [vmem:[%s806 + $0x18] sm:$0xf]
        %v814 = vld [vmem:[%s806 + $0x1c] sm:$0xf]
        %s815 = scalar_lea.vmem %s1, 128
        %v816 = vld [vmem:[%s815] sm:$0xf]
        %v817 = vld [vmem:[%s815 + $0x4] sm:$0xf]
        %v818 = vld [vmem:[%s815 + $0x8] sm:$0xf]
        %v819 = vld [vmem:[%s815 + $0xc] sm:$0xf]
        %v820 = vld [vmem:[%s815 + $0x10] sm:$0xf]
        %v821 = vld [vmem:[%s815 + $0x14] sm:$0xf]
        %v822 = vld [vmem:[%s815 + $0x18] sm:$0xf]
        %v823 = vld [vmem:[%s815 + $0x1c] sm:$0xf]
        %v832 = vunpack.c.l.b16 %v807
        %v833 = vunpack.c.l.b16 %v808
        %v834 = vunpack.c.l.b16 %v809
        %v835 = vunpack.c.l.b16 %v810
        %v836 = vunpack.c.l.b16 %v811
        %v837 = vunpack.c.l.b16 %v812
        %v838 = vunpack.c.l.b16 %v813
        %v839 = vunpack.c.l.b16 %v814
        %v840 = vpack.c.b16 %v833, %v832
        %v841 = vpack.c.b16 %v835, %v834
        %v842 = vpack.c.b16 %v837, %v836
        %v843 = vpack.c.b16 %v839, %v838
        %v852 = vunpack.c.l.b16 %v816
        %v853 = vunpack.c.l.b16 %v817
        %v854 = vunpack.c.l.b16 %v818
        %v855 = vunpack.c.l.b16 %v819
        %v856 = vunpack.c.l.b16 %v820
        %v857 = vunpack.c.l.b16 %v821
        %v858 = vunpack.c.l.b16 %v822
        %v859 = vunpack.c.l.b16 %v823
        %v860 = vpack.c.b16 %v853, %v852
        %v861 = vpack.c.b16 %v855, %v854
        %v862 = vpack.c.b16 %v857, %v856
        %v863 = vpack.c.b16 %v859, %v858
        %v869 = vsel %vm230, %v840, 0
        %v872 = vsel %vm230, %v841, 0
        %v875 = vsel %vm230, %v842, 0
        %v878 = vsel %vm230, %v843, 0
        %880 = vmatprep.subr.bf16.mxu0 0
        %881 = vmatpush1.bf16.msra.mxu0 0
        %882 = vmatprep.subr.bf16.mxu0 0
        %883 = vmatpush1.bf16.msra.mxu0 0
        %884 = vmatprep.subr.bf16.mxu0 0
        %885 = vmatpush1.bf16.msra.mxu0 0
        %886 = vmatprep.subr.bf16.mxu0 0
        %887 = vmatpush1.bf16.msra.mxu0 0
        %888 = vmatprep.subr.bf16.mxu0 0
        %889 = vmatpush1.bf16.msra.mxu0 %v863
        %890 = vmatprep.subr.bf16.mxu0 0
        %891 = vmatpush1.bf16.msra.mxu0 %v862
        %892 = vmatprep.subr.bf16.mxu0 0
        %893 = vmatpush1.bf16.msra.mxu0 %v861
        %894 = vmatprep.subr.bf16.mxu0 0
        %895 = vmatpush1.bf16.msra.mxu0 %v860
        %896 = vmatprep.subr.bf16.mxu0 0
        %897 = vmatpush2.bf16.msra.mxu0 0
        %898 = vmatprep.subr.bf16.mxu0 0
        %899 = vmatpush2.bf16.msra.mxu0 0
        %900 = vmatprep.subr.bf16.mxu0 0
        %901 = vmatpush2.bf16.msra.mxu0 0
        %902 = vmatprep.subr.bf16.mxu0 0
        %903 = vmatpush2.bf16.msra.mxu0 0
        %904 = vmatprep.subr.bf16.mxu0 0
        %905 = vmatpush2.bf16.msra.mxu0 0
        %906 = vmatprep.subr.bf16.mxu0 0
        %907 = vmatpush2.bf16.msra.mxu0 0
        %908 = vmatprep.subr.bf16.mxu0 0
        %909 = vmatpush2.bf16.msra.mxu0 0
        %910 = vmatprep.subr.bf16.mxu0 0
        %911 = vmatpush2.bf16.msra.mxu0 0
        %912 = vmatprep.mubr.bf16.mxu0 0
        %913 = vmatmul.mubr.bf16.gmra.mxu0 %v869
        %v914 = vpop.f32.mrf.mxu0
        %v915 = vadd.f32 0.0, %v914
        %v916 = vpop.f32.mrf.mxu0
        %v917 = vpop.f32.mrf.mxu0
        %v918 = vadd.f32 0.0, %v917
        %v919 = vpop.f32.mrf.mxu0
        %920 = vmatprep.mubr.bf16.mxu0 0
        %921 = vmatmul.mubr.bf16.gmra.mxu0 %v872
        %v922 = vpop.f32.mrf.mxu0
        %v923 = vadd.f32 0.0, %v922
        %v924 = vpop.f32.mrf.mxu0
        %v925 = vpop.f32.mrf.mxu0
        %v926 = vadd.f32 0.0, %v925
        %v927 = vpop.f32.mrf.mxu0
        %928 = vmatprep.mubr.bf16.mxu0 0
        %929 = vmatmul.mubr.bf16.gmra.mxu0 %v875
        %v930 = vpop.f32.mrf.mxu0
        %v931 = vadd.f32 0.0, %v930
        %v932 = vpop.f32.mrf.mxu0
        %v933 = vpop.f32.mrf.mxu0
        %v934 = vadd.f32 0.0, %v933
        %v935 = vpop.f32.mrf.mxu0
        %936 = vmatprep.mubr.bf16.mxu0 0
        %937 = vmatmul.mubr.bf16.gmra.mxu0 %v878
        %v938 = vpop.f32.mrf.mxu0
        %v939 = vadd.f32 0.0, %v938
        %v940 = vpop.f32.mrf.mxu0
        %v941 = vpop.f32.mrf.mxu0
        %v942 = vadd.f32 0.0, %v941
        %v943 = vpop.f32.mrf.mxu0
        %944 = vdwg.mxu0
        %v945 = vld [vmem:[#allocation2] sm:$0xff]
        %v946 = vld [vmem:[#allocation2 + $0x8] sm:$0xff]
        %v947 = vld [vmem:[#allocation2 + $0x10] sm:$0xff]
        %v948 = vld [vmem:[#allocation2 + $0x18] sm:$0xff]
        %v949 = vld [vmem:[#allocation2 + $0x20] sm:$0xff]
        %v950 = vld [vmem:[#allocation2 + $0x28] sm:$0xff]
        %v951 = vld [vmem:[#allocation2 + $0x30] sm:$0xff]
        %v952 = vld [vmem:[#allocation2 + $0x38] sm:$0xff]
        %v953 = vadd.f32 %v945, %v915
        %v954 = vadd.f32 %v946, %v918
        %v955 = vadd.f32 %v947, %v923
        %v956 = vadd.f32 %v948, %v926
        %v957 = vadd.f32 %v949, %v931
        %v958 = vadd.f32 %v950, %v934
        %v959 = vadd.f32 %v951, %v939
        %v960 = vadd.f32 %v952, %v942
        %961 = vst.msk [vmem:[#allocation2] sm:$0xff] %vm308, %v953
        %962 = vst.msk [vmem:[#allocation2 + $0x8] sm:$0xff] %vm308, %v954
        %963 = vst.msk [vmem:[#allocation2 + $0x10] sm:$0xff] %vm308, %v955
        %964 = vst.msk [vmem:[#allocation2 + $0x18] sm:$0xff] %vm308, %v956
        %965 = vst.msk [vmem:[#allocation2 + $0x20] sm:$0xff] %vm308, %v957
        %966 = vst.msk [vmem:[#allocation2 + $0x28] sm:$0xff] %vm308, %v958
        %967 = vst.msk [vmem:[#allocation2 + $0x30] sm:$0xff] %vm308, %v959
        %968 = vst.msk [vmem:[#allocation2 + $0x38] sm:$0xff] %vm308, %v960
        %s969 = scalar_lea.vmem %s168, 180
        %v970 = vld [vmem:[%s969] sm:$0xf]
        %v971 = vld [vmem:[%s969 + $0x4] sm:$0xf]
        %v972 = vld [vmem:[%s969 + $0x8] sm:$0xf]
        %v973 = vld [vmem:[%s969 + $0xc] sm:$0xf]
        %v974 = vld [vmem:[%s969 + $0x10] sm:$0xf]
        %v975 = vld [vmem:[%s969 + $0x14] sm:$0xf]
        %v976 = vld [vmem:[%s969 + $0x18] sm:$0xf]
        %v977 = vld [vmem:[%s969 + $0x1c] sm:$0xf]
        %s978 = scalar_lea.vmem %s1, 160
        %v979 = vld [vmem:[%s978] sm:$0xf]
        %v980 = vld [vmem:[%s978 + $0x4] sm:$0xf]
        %v981 = vld [vmem:[%s978 + $0x8] sm:$0xf]
        %v982 = vld [vmem:[%s978 + $0xc] sm:$0xf]
        %v983 = vld [vmem:[%s978 + $0x10] sm:$0xf]
        %v984 = vld [vmem:[%s978 + $0x14] sm:$0xf]
        %v985 = vld [vmem:[%s978 + $0x18] sm:$0xf]
        %v986 = vld [vmem:[%s978 + $0x1c] sm:$0xf]
        %v995 = vunpack.c.l.b16 %v970
        %v996 = vunpack.c.l.b16 %v971
        %v997 = vunpack.c.l.b16 %v972
        %v998 = vunpack.c.l.b16 %v973
        %v999 = vunpack.c.l.b16 %v974
        %v1000 = vunpack.c.l.b16 %v975
        %v1001 = vunpack.c.l.b16 %v976
        %v1002 = vunpack.c.l.b16 %v977
        %v1003 = vpack.c.b16 %v996, %v995
        %v1004 = vpack.c.b16 %v998, %v997
        %v1005 = vpack.c.b16 %v1000, %v999
        %v1006 = vpack.c.b16 %v1002, %v1001
        %v1015 = vunpack.c.l.b16 %v979
        %v1016 = vunpack.c.l.b16 %v980
        %v1017 = vunpack.c.l.b16 %v981
        %v1018 = vunpack.c.l.b16 %v982
        %v1019 = vunpack.c.l.b16 %v983
        %v1020 = vunpack.c.l.b16 %v984
        %v1021 = vunpack.c.l.b16 %v985
        %v1022 = vunpack.c.l.b16 %v986
        %v1023 = vpack.c.b16 %v1016, %v1015
        %v1024 = vpack.c.b16 %v1018, %v1017
        %v1025 = vpack.c.b16 %v1020, %v1019
        %v1026 = vpack.c.b16 %v1022, %v1021
        %v1032 = vsel %vm230, %v1003, 0
        %v1035 = vsel %vm230, %v1004, 0
        %v1038 = vsel %vm230, %v1005, 0
        %v1041 = vsel %vm230, %v1006, 0
        %1043 = vmatprep.subr.bf16.mxu0 0
        %1044 = vmatpush1.bf16.msra.mxu0 0
        %1045 = vmatprep.subr.bf16.mxu0 0
        %1046 = vmatpush1.bf16.msra.mxu0 0
        %1047 = vmatprep.subr.bf16.mxu0 0
        %1048 = vmatpush1.bf16.msra.mxu0 0
        %1049 = vmatprep.subr.bf16.mxu0 0
        %1050 = vmatpush1.bf16.msra.mxu0 0
        %1051 = vmatprep.subr.bf16.mxu0 0
        %1052 = vmatpush1.bf16.msra.mxu0 %v1026
        %1053 = vmatprep.subr.bf16.mxu0 0
        %1054 = vmatpush1.bf16.msra.mxu0 %v1025
        %1055 = vmatprep.subr.bf16.mxu0 0
        %1056 = vmatpush1.bf16.msra.mxu0 %v1024
        %1057 = vmatprep.subr.bf16.mxu0 0
        %1058 = vmatpush1.bf16.msra.mxu0 %v1023
        %1059 = vmatprep.subr.bf16.mxu0 0
        %1060 = vmatpush2.bf16.msra.mxu0 0
        %1061 = vmatprep.subr.bf16.mxu0 0
        %1062 = vmatpush2.bf16.msra.mxu0 0
        %1063 = vmatprep.subr.bf16.mxu0 0
        %1064 = vmatpush2.bf16.msra.mxu0 0
        %1065 = vmatprep.subr.bf16.mxu0 0
        %1066 = vmatpush2.bf16.msra.mxu0 0
        %1067 = vmatprep.subr.bf16.mxu0 0
        %1068 = vmatpush2.bf16.msra.mxu0 0
        %1069 = vmatprep.subr.bf16.mxu0 0
        %1070 = vmatpush2.bf16.msra.mxu0 0
        %1071 = vmatprep.subr.bf16.mxu0 0
        %1072 = vmatpush2.bf16.msra.mxu0 0
        %1073 = vmatprep.subr.bf16.mxu0 0
        %1074 = vmatpush2.bf16.msra.mxu0 0
        %1075 = vmatprep.mubr.bf16.mxu0 0
        %1076 = vmatmul.mubr.bf16.gmra.mxu0 %v1032
        %v1077 = vpop.f32.mrf.mxu0
        %v1078 = vadd.f32 0.0, %v1077
        %v1079 = vpop.f32.mrf.mxu0
        %v1080 = vpop.f32.mrf.mxu0
        %v1081 = vadd.f32 0.0, %v1080
        %v1082 = vpop.f32.mrf.mxu0
        %1083 = vmatprep.mubr.bf16.mxu0 0
        %1084 = vmatmul.mubr.bf16.gmra.mxu0 %v1035
        %v1085 = vpop.f32.mrf.mxu0
        %v1086 = vadd.f32 0.0, %v1085
        %v1087 = vpop.f32.mrf.mxu0
        %v1088 = vpop.f32.mrf.mxu0
        %v1089 = vadd.f32 0.0, %v1088
        %v1090 = vpop.f32.mrf.mxu0
        %1091 = vmatprep.mubr.bf16.mxu0 0
        %1092 = vmatmul.mubr.bf16.gmra.mxu0 %v1038
        %v1093 = vpop.f32.mrf.mxu0
        %v1094 = vadd.f32 0.0, %v1093
        %v1095 = vpop.f32.mrf.mxu0
        %v1096 = vpop.f32.mrf.mxu0
        %v1097 = vadd.f32 0.0, %v1096
        %v1098 = vpop.f32.mrf.mxu0
        %1099 = vmatprep.mubr.bf16.mxu0 0
        %1100 = vmatmul.mubr.bf16.gmra.mxu0 %v1041
        %v1101 = vpop.f32.mrf.mxu0
        %v1102 = vadd.f32 0.0, %v1101
        %v1103 = vpop.f32.mrf.mxu0
        %v1104 = vpop.f32.mrf.mxu0
        %v1105 = vadd.f32 0.0, %v1104
        %v1106 = vpop.f32.mrf.mxu0
        %1107 = vdwg.mxu0
        %v1108 = vld [vmem:[#allocation2] sm:$0xff]
        %v1109 = vld [vmem:[#allocation2 + $0x8] sm:$0xff]
        %v1110 = vld [vmem:[#allocation2 + $0x10] sm:$0xff]
        %v1111 = vld [vmem:[#allocation2 + $0x18] sm:$0xff]
        %v1112 = vld [vmem:[#allocation2 + $0x20] sm:$0xff]
        %v1113 = vld [vmem:[#allocation2 + $0x28] sm:$0xff]
        %v1114 = vld [vmem:[#allocation2 + $0x30] sm:$0xff]
        %v1115 = vld [vmem:[#allocation2 + $0x38] sm:$0xff]
        %v1116 = vadd.f32 %v1108, %v1078
        %v1117 = vadd.f32 %v1109, %v1081
        %v1118 = vadd.f32 %v1110, %v1086
        %v1119 = vadd.f32 %v1111, %v1089
        %v1120 = vadd.f32 %v1112, %v1094
        %v1121 = vadd.f32 %v1113, %v1097
        %v1122 = vadd.f32 %v1114, %v1102
        %v1123 = vadd.f32 %v1115, %v1105
        %1124 = vst.msk [vmem:[#allocation2] sm:$0xff] %vm308, %v1116
        %1125 = vst.msk [vmem:[#allocation2 + $0x8] sm:$0xff] %vm308, %v1117
        %1126 = vst.msk [vmem:[#allocation2 + $0x10] sm:$0xff] %vm308, %v1118
        %1127 = vst.msk [vmem:[#allocation2 + $0x18] sm:$0xff] %vm308, %v1119
        %1128 = vst.msk [vmem:[#allocation2 + $0x20] sm:$0xff] %vm308, %v1120
        %1129 = vst.msk [vmem:[#allocation2 + $0x28] sm:$0xff] %vm308, %v1121
        %1130 = vst.msk [vmem:[#allocation2 + $0x30] sm:$0xff] %vm308, %v1122
        %1131 = vst.msk [vmem:[#allocation2 + $0x38] sm:$0xff] %vm308, %v1123
        %v1132 = vld [vmem:[%s168 + $0x4] sm:$0xf]
        %v1133 = vld [vmem:[%s168 + $0x8] sm:$0xf]
        %v1134 = vld [vmem:[%s168 + $0xc] sm:$0xf]
        %v1135 = vld [vmem:[%s168 + $0x10] sm:$0xf]
        %v1136 = vld [vmem:[%s168 + $0x14] sm:$0xf]
        %v1137 = vld [vmem:[%s168 + $0x18] sm:$0xf]
        %v1138 = vld [vmem:[%s168 + $0x1c] sm:$0xf]
        %v1139 = vld [vmem:[%s168 + $0x20] sm:$0xf]
        %s1140 = scalar_lea.vmem %s1, 192
        %v1141 = vld [vmem:[%s1140] sm:$0xf]
        %v1142 = vld [vmem:[%s1140 + $0x4] sm:$0xf]
        %v1143 = vld [vmem:[%s1140 + $0x8] sm:$0xf]
        %v1144 = vld [vmem:[%s1140 + $0xc] sm:$0xf]
        %v1145 = vld [vmem:[%s1140 + $0x10] sm:$0xf]
        %v1146 = vld [vmem:[%s1140 + $0x14] sm:$0xf]
        %v1147 = vld [vmem:[%s1140 + $0x18] sm:$0xf]
        %v1148 = vld [vmem:[%s1140 + $0x1c] sm:$0xf]
        %v1157 = vunpack.c.l.b16 %v1132
        %v1158 = vunpack.c.l.b16 %v1133
        %v1159 = vunpack.c.l.b16 %v1134
        %v1160 = vunpack.c.l.b16 %v1135
        %v1161 = vunpack.c.l.b16 %v1136
        %v1162 = vunpack.c.l.b16 %v1137
        %v1163 = vunpack.c.l.b16 %v1138
        %v1164 = vunpack.c.l.b16 %v1139
        %v1165 = vpack.c.b16 %v1158, %v1157
        %v1166 = vpack.c.b16 %v1160, %v1159
        %v1167 = vpack.c.b16 %v1162, %v1161
        %v1168 = vpack.c.b16 %v1164, %v1163
        %v1177 = vunpack.c.l.b16 %v1141
        %v1178 = vunpack.c.l.b16 %v1142
        %v1179 = vunpack.c.l.b16 %v1143
        %v1180 = vunpack.c.l.b16 %v1144
        %v1181 = vunpack.c.l.b16 %v1145
        %v1182 = vunpack.c.l.b16 %v1146
        %v1183 = vunpack.c.l.b16 %v1147
        %v1184 = vunpack.c.l.b16 %v1148
        %v1185 = vpack.c.b16 %v1178, %v1177
        %v1186 = vpack.c.b16 %v1180, %v1179
        %v1187 = vpack.c.b16 %v1182, %v1181
        %v1188 = vpack.c.b16 %v1184, %v1183
        %v1194 = vsel %vm230, %v1165, 0
        %v1197 = vsel %vm230, %v1166, 0
        %v1200 = vsel %vm230, %v1167, 0
        %v1203 = vsel %vm230, %v1168, 0
        %1205 = vmatprep.subr.bf16.mxu0 0
        %1206 = vmatpush1.bf16.msra.mxu0 0
        %1207 = vmatprep.subr.bf16.mxu0 0
        %1208 = vmatpush1.bf16.msra.mxu0 0
        %1209 = vmatprep.subr.bf16.mxu0 0
        %1210 = vmatpush1.bf16.msra.mxu0 0
        %1211 = vmatprep.subr.bf16.mxu0 0
        %1212 = vmatpush1.bf16.msra.mxu0 0
        %1213 = vmatprep.subr.bf16.mxu0 0
        %1214 = vmatpush1.bf16.msra.mxu0 %v1188
        %1215 = vmatprep.subr.bf16.mxu0 0
        %1216 = vmatpush1.bf16.msra.mxu0 %v1187
        %1217 = vmatprep.subr.bf16.mxu0 0
        %1218 = vmatpush1.bf16.msra.mxu0 %v1186
        %1219 = vmatprep.subr.bf16.mxu0 0
        %1220 = vmatpush1.bf16.msra.mxu0 %v1185
        %1221 = vmatprep.subr.bf16.mxu0 0
        %1222 = vmatpush2.bf16.msra.mxu0 0
        %1223 = vmatprep.subr.bf16.mxu0 0
        %1224 = vmatpush2.bf16.msra.mxu0 0
        %1225 = vmatprep.subr.bf16.mxu0 0
        %1226 = vmatpush2.bf16.msra.mxu0 0
        %1227 = vmatprep.subr.bf16.mxu0 0
        %1228 = vmatpush2.bf16.msra.mxu0 0
        %1229 = vmatprep.subr.bf16.mxu0 0
        %1230 = vmatpush2.bf16.msra.mxu0 0
        %1231 = vmatprep.subr.bf16.mxu0 0
        %1232 = vmatpush2.bf16.msra.mxu0 0
        %1233 = vmatprep.subr.bf16.mxu0 0
        %1234 = vmatpush2.bf16.msra.mxu0 0
        %1235 = vmatprep.subr.bf16.mxu0 0
        %1236 = vmatpush2.bf16.msra.mxu0 0
        %1237 = vmatprep.mubr.bf16.mxu0 0
        %1238 = vmatmul.mubr.bf16.gmra.mxu0 %v1194
        %v1239 = vpop.f32.mrf.mxu0
        %v1240 = vadd.f32 0.0, %v1239
        %v1241 = vpop.f32.mrf.mxu0
        %v1242 = vpop.f32.mrf.mxu0
        %v1243 = vadd.f32 0.0, %v1242
        %v1244 = vpop.f32.mrf.mxu0
        %1245 = vmatprep.mubr.bf16.mxu0 0
        %1246 = vmatmul.mubr.bf16.gmra.mxu0 %v1197
        %v1247 = vpop.f32.mrf.mxu0
        %v1248 = vadd.f32 0.0, %v1247
        %v1249 = vpop.f32.mrf.mxu0
        %v1250 = vpop.f32.mrf.mxu0
        %v1251 = vadd.f32 0.0, %v1250
        %v1252 = vpop.f32.mrf.mxu0
        %1253 = vmatprep.mubr.bf16.mxu0 0
        %1254 = vmatmul.mubr.bf16.gmra.mxu0 %v1200
        %v1255 = vpop.f32.mrf.mxu0
        %v1256 = vadd.f32 0.0, %v1255
        %v1257 = vpop.f32.mrf.mxu0
        %v1258 = vpop.f32.mrf.mxu0
        %v1259 = vadd.f32 0.0, %v1258
        %v1260 = vpop.f32.mrf.mxu0
        %1261 = vmatprep.mubr.bf16.mxu0 0
        %1262 = vmatmul.mubr.bf16.gmra.mxu0 %v1203
        %v1263 = vpop.f32.mrf.mxu0
        %v1264 = vadd.f32 0.0, %v1263
        %v1265 = vpop.f32.mrf.mxu0
        %v1266 = vpop.f32.mrf.mxu0
        %v1267 = vadd.f32 0.0, %v1266
        %v1268 = vpop.f32.mrf.mxu0
        %1269 = vdwg.mxu0
        %v1270 = vld [vmem:[#allocation2] sm:$0xff]
        %v1271 = vld [vmem:[#allocation2 + $0x8] sm:$0xff]
        %v1272 = vld [vmem:[#allocation2 + $0x10] sm:$0xff]
        %v1273 = vld [vmem:[#allocation2 + $0x18] sm:$0xff]
        %v1274 = vld [vmem:[#allocation2 + $0x20] sm:$0xff]
        %v1275 = vld [vmem:[#allocation2 + $0x28] sm:$0xff]
        %v1276 = vld [vmem:[#allocation2 + $0x30] sm:$0xff]
        %v1277 = vld [vmem:[#allocation2 + $0x38] sm:$0xff]
        %v1278 = vadd.f32 %v1270, %v1240
        %v1279 = vadd.f32 %v1271, %v1243
        %v1280 = vadd.f32 %v1272, %v1248
        %v1281 = vadd.f32 %v1273, %v1251
        %v1282 = vadd.f32 %v1274, %v1256
        %v1283 = vadd.f32 %v1275, %v1259
        %v1284 = vadd.f32 %v1276, %v1264
        %v1285 = vadd.f32 %v1277, %v1267
        %1286 = vst.msk [vmem:[#allocation2] sm:$0xff] %vm308, %v1278
        %1287 = vst.msk [vmem:[#allocation2 + $0x8] sm:$0xff] %vm308, %v1279
        %1288 = vst.msk [vmem:[#allocation2 + $0x10] sm:$0xff] %vm308, %v1280
        %1289 = vst.msk [vmem:[#allocation2 + $0x18] sm:$0xff] %vm308, %v1281
        %1290 = vst.msk [vmem:[#allocation2 + $0x20] sm:$0xff] %vm308, %v1282
        %1291 = vst.msk [vmem:[#allocation2 + $0x28] sm:$0xff] %vm308, %v1283
        %1292 = vst.msk [vmem:[#allocation2 + $0x30] sm:$0xff] %vm308, %v1284
        %1293 = vst.msk [vmem:[#allocation2 + $0x38] sm:$0xff] %vm308, %v1285
        %v1294 = vld [vmem:[%s317 + $0x4] sm:$0xf]
        %v1295 = vld [vmem:[%s317 + $0x8] sm:$0xf]
        %v1296 = vld [vmem:[%s317 + $0xc] sm:$0xf]
        %v1297 = vld [vmem:[%s317 + $0x10] sm:$0xf]
        %v1298 = vld [vmem:[%s317 + $0x14] sm:$0xf]
        %v1299 = vld [vmem:[%s317 + $0x18] sm:$0xf]
        %v1300 = vld [vmem:[%s317 + $0x1c] sm:$0xf]
        %v1301 = vld [vmem:[%s317 + $0x20] sm:$0xf]
        %s1302 = scalar_lea.vmem %s1, 224
        %v1303 = vld [vmem:[%s1302] sm:$0xf]
        %v1304 = vld [vmem:[%s1302 + $0x4] sm:$0xf]
        %v1305 = vld [vmem:[%s1302 + $0x8] sm:$0xf]
        %v1306 = vld [vmem:[%s1302 + $0xc] sm:$0xf]
        %v1307 = vld [vmem:[%s1302 + $0x10] sm:$0xf]
        %v1308 = vld [vmem:[%s1302 + $0x14] sm:$0xf]
        %v1309 = vld [vmem:[%s1302 + $0x18] sm:$0xf]
        %v1310 = vld [vmem:[%s1302 + $0x1c] sm:$0xf]
        %v1319 = vunpack.c.l.b16 %v1294
        %v1320 = vunpack.c.l.b16 %v1295
        %v1321 = vunpack.c.l.b16 %v1296
        %v1322 = vunpack.c.l.b16 %v1297
        %v1323 = vunpack.c.l.b16 %v1298
        %v1324 = vunpack.c.l.b16 %v1299
        %v1325 = vunpack.c.l.b16 %v1300
        %v1326 = vunpack.c.l.b16 %v1301
        %v1327 = vpack.c.b16 %v1320, %v1319
        %v1328 = vpack.c.b16 %v1322, %v1321
        %v1329 = vpack.c.b16 %v1324, %v1323
        %v1330 = vpack.c.b16 %v1326, %v1325
        %v1339 = vunpack.c.l.b16 %v1303
        %v1340 = vunpack.c.l.b16 %v1304
        %v1341 = vunpack.c.l.b16 %v1305
        %v1342 = vunpack.c.l.b16 %v1306
        %v1343 = vunpack.c.l.b16 %v1307
        %v1344 = vunpack.c.l.b16 %v1308
        %v1345 = vunpack.c.l.b16 %v1309
        %v1346 = vunpack.c.l.b16 %v1310
        %v1347 = vpack.c.b16 %v1340, %v1339
        %v1348 = vpack.c.b16 %v1342, %v1341
        %v1349 = vpack.c.b16 %v1344, %v1343
        %v1350 = vpack.c.b16 %v1346, %v1345
        %v1356 = vsel %vm230, %v1327, 0
        %v1359 = vsel %vm230, %v1328, 0
        %v1362 = vsel %vm230, %v1329, 0
        %v1365 = vsel %vm230, %v1330, 0
        %1367 = vmatprep.subr.bf16.mxu0 0
        %1368 = vmatpush1.bf16.msra.mxu0 0
        %1369 = vmatprep.subr.bf16.mxu0 0
        %1370 = vmatpush1.bf16.msra.mxu0 0
        %1371 = vmatprep.subr.bf16.mxu0 0
        %1372 = vmatpush1.bf16.msra.mxu0 0
        %1373 = vmatprep.subr.bf16.mxu0 0
        %1374 = vmatpush1.bf16.msra.mxu0 0
        %1375 = vmatprep.subr.bf16.mxu0 0
        %1376 = vmatpush1.bf16.msra.mxu0 %v1350
        %1377 = vmatprep.subr.bf16.mxu0 0
        %1378 = vmatpush1.bf16.msra.mxu0 %v1349
        %1379 = vmatprep.subr.bf16.mxu0 0
        %1380 = vmatpush1.bf16.msra.mxu0 %v1348
        %1381 = vmatprep.subr.bf16.mxu0 0
        %1382 = vmatpush1.bf16.msra.mxu0 %v1347
        %1383 = vmatprep.subr.bf16.mxu0 0
        %1384 = vmatpush2.bf16.msra.mxu0 0
        %1385 = vmatprep.subr.bf16.mxu0 0
        %1386 = vmatpush2.bf16.msra.mxu0 0
        %1387 = vmatprep.subr.bf16.mxu0 0
        %1388 = vmatpush2.bf16.msra.mxu0 0
        %1389 = vmatprep.subr.bf16.mxu0 0
        %1390 = vmatpush2.bf16.msra.mxu0 0
        %1391 = vmatprep.subr.bf16.mxu0 0
        %1392 = vmatpush2.bf16.msra.mxu0 0
        %1393 = vmatprep.subr.bf16.mxu0 0
        %1394 = vmatpush2.bf16.msra.mxu0 0
        %1395 = vmatprep.subr.bf16.mxu0 0
        %1396 = vmatpush2.bf16.msra.mxu0 0
        %1397 = vmatprep.subr.bf16.mxu0 0
        %1398 = vmatpush2.bf16.msra.mxu0 0
        %1399 = vmatprep.mubr.bf16.mxu0 0
        %1400 = vmatmul.mubr.bf16.gmra.mxu0 %v1356
        %v1401 = vpop.f32.mrf.mxu0
        %v1402 = vadd.f32 0.0, %v1401
        %v1403 = vpop.f32.mrf.mxu0
        %v1404 = vpop.f32.mrf.mxu0
        %v1405 = vadd.f32 0.0, %v1404
        %v1406 = vpop.f32.mrf.mxu0
        %1407 = vmatprep.mubr.bf16.mxu0 0
        %1408 = vmatmul.mubr.bf16.gmra.mxu0 %v1359
        %v1409 = vpop.f32.mrf.mxu0
        %v1410 = vadd.f32 0.0, %v1409
        %v1411 = vpop.f32.mrf.mxu0
        %v1412 = vpop.f32.mrf.mxu0
        %v1413 = vadd.f32 0.0, %v1412
        %v1414 = vpop.f32.mrf.mxu0
        %1415 = vmatprep.mubr.bf16.mxu0 0
        %1416 = vmatmul.mubr.bf16.gmra.mxu0 %v1362
        %v1417 = vpop.f32.mrf.mxu0
        %v1418 = vadd.f32 0.0, %v1417
        %v1419 = vpop.f32.mrf.mxu0
        %v1420 = vpop.f32.mrf.mxu0
        %v1421 = vadd.f32 0.0, %v1420
        %v1422 = vpop.f32.mrf.mxu0
        %1423 = vmatprep.mubr.bf16.mxu0 0
        %1424 = vmatmul.mubr.bf16.gmra.mxu0 %v1365
        %v1425 = vpop.f32.mrf.mxu0
        %v1426 = vadd.f32 0.0, %v1425
        %v1427 = vpop.f32.mrf.mxu0
        %v1428 = vpop.f32.mrf.mxu0
        %v1429 = vadd.f32 0.0, %v1428
        %v1430 = vpop.f32.mrf.mxu0
        %1431 = vdwg.mxu0
        %v1432 = vld [vmem:[#allocation2] sm:$0xff]
        %v1433 = vld [vmem:[#allocation2 + $0x8] sm:$0xff]
        %v1434 = vld [vmem:[#allocation2 + $0x10] sm:$0xff]
        %v1435 = vld [vmem:[#allocation2 + $0x18] sm:$0xff]
        %v1436 = vld [vmem:[#allocation2 + $0x20] sm:$0xff]
        %v1437 = vld [vmem:[#allocation2 + $0x28] sm:$0xff]
        %v1438 = vld [vmem:[#allocation2 + $0x30] sm:$0xff]
        %v1439 = vld [vmem:[#allocation2 + $0x38] sm:$0xff]
        %v1440 = vadd.f32 %v1432, %v1402
        %v1441 = vadd.f32 %v1433, %v1405
        %v1442 = vadd.f32 %v1434, %v1410
        %v1443 = vadd.f32 %v1435, %v1413
        %v1444 = vadd.f32 %v1436, %v1418
        %v1445 = vadd.f32 %v1437, %v1421
        %v1446 = vadd.f32 %v1438, %v1426
        %v1447 = vadd.f32 %v1439, %v1429
        %1448 = vst.msk [vmem:[#allocation2] sm:$0xff] %vm308, %v1440
        %1449 = vst.msk [vmem:[#allocation2 + $0x8] sm:$0xff] %vm308, %v1441
        %1450 = vst.msk [vmem:[#allocation2 + $0x10] sm:$0xff] %vm308, %v1442
        %1451 = vst.msk [vmem:[#allocation2 + $0x18] sm:$0xff] %vm308, %v1443
        %1452 = vst.msk [vmem:[#allocation2 + $0x20] sm:$0xff] %vm308, %v1444
        %1453 = vst.msk [vmem:[#allocation2 + $0x28] sm:$0xff] %vm308, %v1445
        %1454 = vst.msk [vmem:[#allocation2 + $0x30] sm:$0xff] %vm308, %v1446
        %1455 = vst.msk [vmem:[#allocation2 + $0x38] sm:$0xff] %vm308, %v1447
        %v1456 = vld [vmem:[%s480 + $0x4] sm:$0xf]
        %v1457 = vld [vmem:[%s480 + $0x8] sm:$0xf]
        %v1458 = vld [vmem:[%s480 + $0xc] sm:$0xf]
        %v1459 = vld [vmem:[%s480 + $0x10] sm:$0xf]
        %v1460 = vld [vmem:[%s480 + $0x14] sm:$0xf]
        %v1461 = vld [vmem:[%s480 + $0x18] sm:$0xf]
        %v1462 = vld [vmem:[%s480 + $0x1c] sm:$0xf]
        %v1463 = vld [vmem:[%s480 + $0x20] sm:$0xf]
        %s1464 = scalar_lea.vmem %s1, 256
        %v1465 = vld [vmem:[%s1464] sm:$0xf]
        %v1466 = vld [vmem:[%s1464 + $0x4] sm:$0xf]
        %v1467 = vld [vmem:[%s1464 + $0x8] sm:$0xf]
        %v1468 = vld [vmem:[%s1464 + $0xc] sm:$0xf]
        %v1469 = vld [vmem:[%s1464 + $0x10] sm:$0xf]
        %v1470 = vld [vmem:[%s1464 + $0x14] sm:$0xf]
        %v1471 = vld [vmem:[%s1464 + $0x18] sm:$0xf]
        %v1472 = vld [vmem:[%s1464 + $0x1c] sm:$0xf]
        %v1481 = vunpack.c.l.b16 %v1456
        %v1482 = vunpack.c.l.b16 %v1457
        %v1483 = vunpack.c.l.b16 %v1458
        %v1484 = vunpack.c.l.b16 %v1459
        %v1485 = vunpack.c.l.b16 %v1460
        %v1486 = vunpack.c.l.b16 %v1461
        %v1487 = vunpack.c.l.b16 %v1462
        %v1488 = vunpack.c.l.b16 %v1463
        %v1489 = vpack.c.b16 %v1482, %v1481
        %v1490 = vpack.c.b16 %v1484, %v1483
        %v1491 = vpack.c.b16 %v1486, %v1485
        %v1492 = vpack.c.b16 %v1488, %v1487
        %v1501 = vunpack.c.l.b16 %v1465
        %v1502 = vunpack.c.l.b16 %v1466
        %v1503 = vunpack.c.l.b16 %v1467
        %v1504 = vunpack.c.l.b16 %v1468
        %v1505 = vunpack.c.l.b16 %v1469
        %v1506 = vunpack.c.l.b16 %v1470
        %v1507 = vunpack.c.l.b16 %v1471
        %v1508 = vunpack.c.l.b16 %v1472
        %v1509 = vpack.c.b16 %v1502, %v1501
        %v1510 = vpack.c.b16 %v1504, %v1503
        %v1511 = vpack.c.b16 %v1506, %v1505
        %v1512 = vpack.c.b16 %v1508, %v1507
        %v1518 = vsel %vm230, %v1489, 0
        %v1521 = vsel %vm230, %v1490, 0
        %v1524 = vsel %vm230, %v1491, 0
        %v1527 = vsel %vm230, %v1492, 0
        %1529 = vmatprep.subr.bf16.mxu0 0
        %1530 = vmatpush1.bf16.msra.mxu0 0
        %1531 = vmatprep.subr.bf16.mxu0 0
        %1532 = vmatpush1.bf16.msra.mxu0 0
        %1533 = vmatprep.subr.bf16.mxu0 0
        %1534 = vmatpush1.bf16.msra.mxu0 0
        %1535 = vmatprep.subr.bf16.mxu0 0
        %1536 = vmatpush1.bf16.msra.mxu0 0
        %1537 = vmatprep.subr.bf16.mxu0 0
        %1538 = vmatpush1.bf16.msra.mxu0 %v1512
        %1539 = vmatprep.subr.bf16.mxu0 0
        %1540 = vmatpush1.bf16.msra.mxu0 %v1511
        %1541 = vmatprep.subr.bf16.mxu0 0
        %1542 = vmatpush1.bf16.msra.mxu0 %v1510
        %1543 = vmatprep.subr.bf16.mxu0 0
        %1544 = vmatpush1.bf16.msra.mxu0 %v1509
        %1545 = vmatprep.subr.bf16.mxu0 0
        %1546 = vmatpush2.bf16.msra.mxu0 0
        %1547 = vmatprep.subr.bf16.mxu0 0
        %1548 = vmatpush2.bf16.msra.mxu0 0
        %1549 = vmatprep.subr.bf16.mxu0 0
        %1550 = vmatpush2.bf16.msra.mxu0 0
        %1551 = vmatprep.subr.bf16.mxu0 0
        %1552 = vmatpush2.bf16.msra.mxu0 0
        %1553 = vmatprep.subr.bf16.mxu0 0
        %1554 = vmatpush2.bf16.msra.mxu0 0
        %1555 = vmatprep.subr.bf16.mxu0 0
        %1556 = vmatpush2.bf16.msra.mxu0 0
        %1557 = vmatprep.subr.bf16.mxu0 0
        %1558 = vmatpush2.bf16.msra.mxu0 0
        %1559 = vmatprep.subr.bf16.mxu0 0
        %1560 = vmatpush2.bf16.msra.mxu0 0
        %1561 = vmatprep.mubr.bf16.mxu0 0
        %1562 = vmatmul.mubr.bf16.gmra.mxu0 %v1518
        %v1563 = vpop.f32.mrf.mxu0
        %v1564 = vadd.f32 0.0, %v1563
        %v1565 = vpop.f32.mrf.mxu0
        %v1566 = vpop.f32.mrf.mxu0
        %v1567 = vadd.f32 0.0, %v1566
        %v1568 = vpop.f32.mrf.mxu0
        %1569 = vmatprep.mubr.bf16.mxu0 0
        %1570 = vmatmul.mubr.bf16.gmra.mxu0 %v1521
        %v1571 = vpop.f32.mrf.mxu0
        %v1572 = vadd.f32 0.0, %v1571
        %v1573 = vpop.f32.mrf.mxu0
        %v1574 = vpop.f32.mrf.mxu0
        %v1575 = vadd.f32 0.0, %v1574
        %v1576 = vpop.f32.mrf.mxu0
        %1577 = vmatprep.mubr.bf16.mxu0 0
        %1578 = vmatmul.mubr.bf16.gmra.mxu0 %v1524
        %v1579 = vpop.f32.mrf.mxu0
        %v1580 = vadd.f32 0.0, %v1579
        %v1581 = vpop.f32.mrf.mxu0
        %v1582 = vpop.f32.mrf.mxu0
        %v1583 = vadd.f32 0.0, %v1582
        %v1584 = vpop.f32.mrf.mxu0
        %1585 = vmatprep.mubr.bf16.mxu0 0
        %1586 = vmatmul.mubr.bf16.gmra.mxu0 %v1527
        %v1587 = vpop.f32.mrf.mxu0
        %v1588 = vadd.f32 0.0, %v1587
        %v1589 = vpop.f32.mrf.mxu0
        %v1590 = vpop.f32.mrf.mxu0
        %v1591 = vadd.f32 0.0, %v1590
        %v1592 = vpop.f32.mrf.mxu0
        %1593 = vdwg.mxu0
        %v1594 = vld [vmem:[#allocation2] sm:$0xff]
        %v1595 = vld [vmem:[#allocation2 + $0x8] sm:$0xff]
        %v1596 = vld [vmem:[#allocation2 + $0x10] sm:$0xff]
        %v1597 = vld [vmem:[#allocation2 + $0x18] sm:$0xff]
        %v1598 = vld [vmem:[#allocation2 + $0x20] sm:$0xff]
        %v1599 = vld [vmem:[#allocation2 + $0x28] sm:$0xff]
        %v1600 = vld [vmem:[#allocation2 + $0x30] sm:$0xff]
        %v1601 = vld [vmem:[#allocation2 + $0x38] sm:$0xff]
        %v1602 = vadd.f32 %v1594, %v1564
        %v1603 = vadd.f32 %v1595, %v1567
        %v1604 = vadd.f32 %v1596, %v1572
        %v1605 = vadd.f32 %v1597, %v1575
        %v1606 = vadd.f32 %v1598, %v1580
        %v1607 = vadd.f32 %v1599, %v1583
        %v1608 = vadd.f32 %v1600, %v1588
        %v1609 = vadd.f32 %v1601, %v1591
        %1610 = vst.msk [vmem:[#allocation2] sm:$0xff] %vm308, %v1602
        %1611 = vst.msk [vmem:[#allocation2 + $0x8] sm:$0xff] %vm308, %v1603
        %1612 = vst.msk [vmem:[#allocation2 + $0x10] sm:$0xff] %vm308, %v1604
        %1613 = vst.msk [vmem:[#allocation2 + $0x18] sm:$0xff] %vm308, %v1605
        %1614 = vst.msk [vmem:[#allocation2 + $0x20] sm:$0xff] %vm308, %v1606
        %1615 = vst.msk [vmem:[#allocation2 + $0x28] sm:$0xff] %vm308, %v1607
        %1616 = vst.msk [vmem:[#allocation2 + $0x30] sm:$0xff] %vm308, %v1608
        %1617 = vst.msk [vmem:[#allocation2 + $0x38] sm:$0xff] %vm308, %v1609
        %v1618 = vld [vmem:[#allocation2] sm:$0xff]
        %v1619 = vld [vmem:[#allocation2 + $0x8] sm:$0xff]
        %v1620 = vld [vmem:[#allocation2 + $0x10] sm:$0xff]
        %v1621 = vld [vmem:[#allocation2 + $0x18] sm:$0xff]
        %v1622 = vld [vmem:[#allocation2 + $0x20] sm:$0xff]
        %v1623 = vld [vmem:[#allocation2 + $0x28] sm:$0xff]
        %v1624 = vld [vmem:[#allocation2 + $0x30] sm:$0xff]
        %v1625 = vld [vmem:[#allocation2 + $0x38] sm:$0xff]
        %v1626 = vld [vmem:[%s2] sm:$0x1]
        %v1628 = vlaneseq
        %v1629 = vshrl.u32 %v1628, 7
        %v1630 = vsub.s32 0, %v1629
        %v1631 = vrot.slane %v1626, %v1630
        %v1633 = vadd.f32 %v1618, %v1631
        %v1634 = vadd.f32 %v1619, %v1631
        %v1635 = vadd.f32 %v1620, %v1631
        %v1636 = vadd.f32 %v1621, %v1631
        %v1637 = vadd.f32 %v1622, %v1631
        %v1638 = vadd.f32 %v1623, %v1631
        %v1639 = vadd.f32 %v1624, %v1631
        %v1640 = vadd.f32 %v1625, %v1631
        %v1641 = vmax.f32 %v1633, 0.0
        %v1642 = vmax.f32 %v1634, 0.0
        %v1643 = vmax.f32 %v1635, 0.0
        %v1644 = vmax.f32 %v1636, 0.0
        %v1645 = vmax.f32 %v1637, 0.0
        %v1646 = vmax.f32 %v1638, 0.0
        %v1647 = vmax.f32 %v1639, 0.0
        %v1648 = vmax.f32 %v1640, 0.0
        %1649 = vst.msk [vmem:[%s163] sm:$0xff] %vm308, %v1641
        %1650 = vst.msk [vmem:[%s163 + $0x8] sm:$0xff] %vm308, %v1642
        %1651 = vst.msk [vmem:[%s163 + $0x10] sm:$0xff] %vm308, %v1643
        %1652 = vst.msk [vmem:[%s163 + $0x18] sm:$0xff] %vm308, %v1644
        %1653 = vst.msk [vmem:[%s163 + $0x20] sm:$0xff] %vm308, %v1645
        %1654 = vst.msk [vmem:[%s163 + $0x28] sm:$0xff] %vm308, %v1646
        %1655 = vst.msk [vmem:[%s163 + $0x30] sm:$0xff] %vm308, %v1647
        %1656 = vst.msk [vmem:[%s163 + $0x38] sm:$0xff] %vm308, %v1648
        %s1657 = sand.u32 %s93, 1
        %s1658 = scalar_lea.sflag [#allocation4], %s1657
        %s1659 = sand.u32 %s93, 1
        %s1660 = smul.addr %s1659, 64
        %s1661 = scalar_lea.vmem [#allocation3], %s1660
        // Predicated region
        $region33: #{patch_embed_forward.3} parent=31 // pred_check
          %p1662 = pneg %p103
        $region34: #{patch_embed_forward.3} parent=31 // pred_check_branch
          %1664 = sbr.rel (%p1662) target = $region36
        $region35: #{patch_embed_forward.3} parent=31 // pred_region
          %s1666 = ssub.s32 1024, 1024
          %1667 = vsyncadd %s1658, %s1666
          %s1668 = smul.addr %s17, 8
          %s1669 = smul.addr %s1668, 128
          %s1670 = scalar_lea.hbm %s3, %s1669
          %s1671 = sshll.u32 %s1661, 4
          %s1672 = int_to_ptr.vmem [resolvable:$true] %s1671
          %1677 = dma.vmem_to_hbm [thread:$0]  %s1672, 1024, %s1670, %s1658, 128, 128, 8
        $region36: #{patch_embed_forward.3} parent=31 // pred_fallthru
          _
      $region32: #{patch_embed_forward.3} parent=5 // pred_fallthru
        _
      %p1678 = scmp.le.s32.totalorder 2, %s12
      // Predicated region
      $region37: #{patch_embed_forward.3} parent=5 // pred_check
        %p1679 = pneg %p1678
      $region38: #{patch_embed_forward.3} parent=5 // pred_check_branch
        %1681 = sbr.rel (%p1679) target = $region40
      $region39: #{patch_embed_forward.3} parent=5 // pred_region
        %s1682 = ssub.s32 %s12, 2
        // Predicated region
        $region41: #{patch_embed_forward.3} parent=39 // pred_check
          %p1683 = pneg %p109
        $region42: #{patch_embed_forward.3} parent=39 // pred_check_branch
          %1685 = sbr.rel (%p1683) target = $region44
        $region43: #{patch_embed_forward.3} parent=39 // pred_region
          %s1686 = sand.u32 %s94, 1
          %s1687 = scalar_lea.sflag [#allocation4], %s1686
          %s1688 = sand.u32 %s94, 1
          %s1689 = smul.addr %s1688, 64
          %s1690 = scalar_lea.vmem [#allocation3], %s1689
          %1691 = dma.done %s1687, 1024
        $region44: #{patch_embed_forward.3} parent=39 // pred_fallthru
          _
      $region40: #{patch_embed_forward.3} parent=5 // pred_fallthru
        _
    $region6: #{patch_embed_forward.3} parent=1 // loop_footer
      %s16 = sadd.s32 1, %s12
    $region7: #{patch_embed_forward.3} parent=1 // loop_footer_branch
      %11 = sbr.rel target = $region3
    $region8: #{patch_embed_forward.3} parent=1 // loop_exit
      _
    %1692 = vsyncpa [#allocation4], 1
    %s1693 = scalar_lea.sflag [#allocation4], 1
    %1694 = vsyncpa %s1693, 1

</llo_original>
